<compile_context>
chip_gen: v6e
topology: v6e:2x2x1
jax: 0.10.0
libtpu: 0.0.40
codegen_flags: <defaults>
</compile_context>

<pallas_src>
import jax
import jax.numpy as jnp
from jax.experimental import pallas as pl
from jax.experimental.pallas import tpu as pltpu


_NEG_INF = -1e30  # bias for padded class columns -> exp() underflows to exactly 0


def _round_up(x: int, m: int) -> int:
    return ((x + m - 1) // m) * m


def mlp_softmax_kernel(x_ref, w1_ref, b1_ref, w2_ref, b2_ref, o_ref):
    # Cast x to bf16 on-chip (hidden under MXU work) instead of in the wrapper.
    x = x_ref[...].astype(jnp.bfloat16)
    # fc1: [TB, D](bf16) @ [D, Hp](bf16) -> f32 accumulate; bias + ReLU in f32.
    h = jnp.dot(x, w1_ref[...], preferred_element_type=jnp.float32)
    h = jnp.maximum(h + b1_ref[...], 0.0)
    # fc2: [TB, Hp](bf16) @ [Hp, Cp](bf16) -> f32 accumulate; bias in f32.
    logits = jnp.dot(h.astype(jnp.bfloat16), w2_ref[...],
                     preferred_element_type=jnp.float32)
    logits = logits + b2_ref[...]
    # Numerically stable softmax over the padded, lane-dense class axis (f32).
    # Padded columns carry a -1e30 bias => exp() == 0 exactly, so they perturb
    # neither the row max nor the denominator.
    m = jnp.max(logits, axis=1, keepdims=True)
    e = jnp.exp(logits - m)
    denom = jnp.sum(e, axis=1, keepdims=True)
    o_ref[...] = (e * pl.reciprocal(denom, approx=False)).astype(o_ref.dtype)


def prepare_params(w1, b1, w2, b2):
    """One-time parameter prep (call at load time, NOT per forward).

    PyTorch layout [out, in] -> matmul layout [in, out]; H and C padded to
    multiples of 128; matmul operands stored as bf16, biases kept f32.
    Returns (w1_t [D,Hp] bf16, b1_r [1,Hp] f32, w2_t [Hp,Cp] bf16,
             b2_r [1,Cp] f32, num_classes).
    """
    w1 = jnp.asarray(w1, jnp.float32)   # [H, D]
    b1 = jnp.asarray(b1, jnp.float32)   # [H]
    w2 = jnp.asarray(w2, jnp.float32)   # [C, H]
    b2 = jnp.asarray(b2, jnp.float32)   # [C]
    H, _D = w1.shape
    C = w2.shape[0]
    Hp = _round_up(H, 128)
    Cp = _round_up(C, 128)

    w1_p = jnp.zeros((Hp, _D), jnp.float32).at[:H, :].set(w1)       # zero-pad hidden
    b1_p = jnp.zeros((Hp,), jnp.float32).at[:H].set(b1)
    w2_p = jnp.zeros((Cp, Hp), jnp.float32).at[:C, :H].set(w2)      # zero-pad classes/hidden
    b2_p = jnp.full((Cp,), _NEG_INF, jnp.float32).at[:C].set(b2)    # -inf-ish padded classes

    w1_t = w1_p.T.astype(jnp.bfloat16)   # [D, Hp]
    w2_t = w2_p.T.astype(jnp.bfloat16)   # [Hp, Cp]
    b1_r = b1_p[None, :]                 # [1, Hp] f32
    b2_r = b2_p[None, :]                 # [1, Cp] f32
    return w1_t, b1_r, w2_t, b2_r, C


def _pick_vmem_limit_bytes() -> int:
    """Scoped-VMEM budget: generous on 128 MiB parts, tight on v7x (64 MiB/TC)."""
    try:
        kind = jax.devices()[0].device_kind.lower()
    except Exception:
        kind = ""
    if ("v4" in kind) or ("v5" in kind) or ("v6" in kind):
        return 100 * 1024 * 1024
    return 48 * 1024 * 1024


def _batch_tile(B: int, block_b: int) -> int:
    """Batch tile: multiple of 8 (sublane), <= block_b, and small enough that the
    grid has >= 2 steps so the 'parallel' batch axis lands work on both v7x TCs."""
    if B <= 8:
        return B                      # block == full array dim is always legal
    tb = min(block_b, B)
    tb = min(tb, -(-B // 2))          # ceil(B/2): at least 2 grid tiles
    tb = max(8, (tb // 8) * 8)
    return tb


def _build_call(B, D, Hp, Cp, tb, *, single_buffer_weights):
    # Weights/biases: constant index_map -> resident in VMEM across grid steps;
    # optionally single-buffered (pl.Buffered(1)) to reclaim ~half that VMEM.
    # x tile keeps default double-buffering so its DMA overlaps compute.
    wkw = dict(pipeline_mode=pl.Buffered(1)) if single_buffer_weights else {}
    grid = (pl.cdiv(B, tb),)
    return pl.pallas_call(
        mlp_softmax_kernel,
        out_shape=jax.ShapeDtypeStruct((B, Cp), jnp.float32),
        grid=grid,
        in_specs=[
            pl.BlockSpec((tb, D), lambda i: (i, 0)),           # x tile moves with grid
            pl.BlockSpec((D, Hp), lambda i: (0, 0), **wkw),    # w1 resident
            pl.BlockSpec((1, Hp), lambda i: (0, 0), **wkw),    # b1 resident
            pl.BlockSpec((Hp, Cp), lambda i: (0, 0), **wkw),   # w2 resident
            pl.BlockSpec((1, Cp), lambda i: (0, 0), **wkw),    # b2 resident
        ],
        out_specs=pl.BlockSpec((tb, Cp), lambda i: (i, 0)),
        compiler_params=pltpu.CompilerParams(
            dimension_semantics=("parallel",),   # independent batch tiles
            vmem_limit_bytes=_pick_vmem_limit_bytes(),
        ),
    )


def net_forward(x, w1_t, b1_r, w2_t, b2_r, num_classes, *, block_b=256):
    """x: [B, D] (f32 or bf16); params from `prepare_params`.
    Returns [B, num_classes] f32 softmax probabilities."""
    B, D = x.shape
    Hp = w1_t.shape[1]
    Cp = w2_t.shape[1]
    tb = _batch_tile(B, block_b)

    try:
        call = _build_call(B, D, Hp, Cp, tb, single_buffer_weights=True)
        out = call(x, w1_t, b1_r, w2_t, b2_r)
    except Exception:
        # Compatibility fallback if this JAX build rejects pl.Buffered(1) on
        # pallas_call input specs: keep default double-buffered weights.
        call = _build_call(B, D, Hp, Cp, tb, single_buffer_weights=False)
        out = call(x, w1_t, b1_r, w2_t, b2_r)

    # Lane-dense [B, Cp] writeback happened inside the kernel; trim pad here (tiny).
    return out[:, :num_classes]


def reference_forward(x, w1, b1, w2, b2):
    h = jnp.maximum(x @ w1.T + b1, 0.0)
    logits = h @ w2.T + b2
    return jax.nn.softmax(logits, axis=1)


if __name__ == "__main__":
    # Small shapes consistent with the module (flattened-image MLP). The real
    # model is D=3072, H=1000, C=10; here H is deliberately NOT a multiple of
    # 128 so the H-padding path (1000 -> 1024 analog) is exercised.
    batch = 64
    input_size = 256
    hidden_size = 120
    num_classes = 10

    key = jax.random.PRNGKey(0)
    kx, kw1, kb1, kw2, kb2 = jax.random.split(key, 5)

    x = jax.random.normal(kx, (batch, input_size), dtype=jnp.float32)
    # PyTorch nn.Linear layouts: weight [out, in], bias [out].
    w1 = jax.random.normal(kw1, (hidden_size, input_size), jnp.float32) * 0.02
    b1 = jax.random.normal(kb1, (hidden_size,), jnp.float32) * 0.02
    w2 = jax.random.normal(kw2, (num_classes, hidden_size), jnp.float32) * 0.02
    b2 = jax.random.normal(kb2, (num_classes,), jnp.float32) * 0.02

    # One-time parameter prep (layout transpose, bf16 cast, H/C lane padding).
    w1_t, b1_r, w2_t, b2_r, n_cls = prepare_params(w1, b1, w2, b2)

    out = net_forward(x, w1_t, b1_r, w2_t, b2_r, n_cls, block_b=256)
    out = jax.block_until_ready(out)

    ref = reference_forward(x, w1, b1, w2, b2)
    assert out.shape == (batch, num_classes), out.shape
    # bf16 matmul operands vs f32 reference -> loosened elementwise tolerance.
    assert jnp.allclose(out, ref, atol=5e-3, rtol=5e-3), "mismatch vs reference"
    # Softmax is normalized in f32; padded class columns contribute exactly 0.
    assert jnp.allclose(jnp.sum(out, axis=1), 1.0, atol=1e-5), "softmax rows must sum to 1"

    print("KERNEL_OK")
</pallas_src>

<mosaic_0001>
module attributes {stable_mosaic.version = 11 : i64} {
  func.func @mlp_softmax_kernel(%arg0: i32, %arg1: memref<32x256xf32, #tpu.memory_space<vmem>>, %arg2: memref<256x128xbf16, #tpu.memory_space<vmem>>, %arg3: memref<1x128xf32, #tpu.memory_space<vmem>>, %arg4: memref<128x128xbf16, #tpu.memory_space<vmem>>, %arg5: memref<1x128xf32, #tpu.memory_space<vmem>>, %arg6: memref<32x128xf32, #tpu.memory_space<vmem>>) attributes {dimension_semantics = [#tpu.dimension_semantics<parallel>], iteration_bounds = array<i64: 2>, scalar_prefetch = 0 : i64, scratch_operands = 0 : i64, tpu.core_type = #tpu.core_type<tc>, window_params = [{transform_indices = @transform_0, window_bounds = array<i64: 32, 256>}, {pipeline_mode = #tpu.pipeline_mode<synchronous>, transform_indices = @transform_1, window_bounds = array<i64: 256, 128>}, {pipeline_mode = #tpu.pipeline_mode<synchronous>, transform_indices = @transform_2, window_bounds = array<i64: 1, 128>}, {pipeline_mode = #tpu.pipeline_mode<synchronous>, transform_indices = @transform_3, window_bounds = array<i64: 128, 128>}, {pipeline_mode = #tpu.pipeline_mode<synchronous>, transform_indices = @transform_4, window_bounds = array<i64: 1, 128>}, {transform_indices = @transform_5, window_bounds = array<i64: 32, 128>}]} {
    %c0 = arith.constant 0 : index
    %c0_0 = arith.constant 0 : index
    %0 = vector.load %arg1[%c0, %c0_0] : memref<32x256xf32, #tpu.memory_space<vmem>>, vector<32x256xf32>
    %1 = arith.truncf %0 : vector<32x256xf32> to vector<32x256xbf16>
    %c0_1 = arith.constant 0 : index
    %c0_2 = arith.constant 0 : index
    %2 = vector.load %arg2[%c0_1, %c0_2] : memref<256x128xbf16, #tpu.memory_space<vmem>>, vector<256x128xbf16>
    %cst = arith.constant dense<0.000000e+00> : vector<32x128xf32>
    %3 = tpu.matmul %1, %2, %cst {dimension_numbers = #tpu.dot_dimension_numbers<[1], [0], [0], [1], [0, 0, 1, 1], [], []>} : vector<32x256xbf16>, vector<256x128xbf16>, vector<32x128xf32> -> vector<32x128xf32>
    %c0_3 = arith.constant 0 : index
    %c0_4 = arith.constant 0 : index
    %4 = vector.load %arg3[%c0_3, %c0_4] : memref<1x128xf32, #tpu.memory_space<vmem>>, vector<1x128xf32>
    %5 = vector.broadcast %4 : vector<1x128xf32> to vector<32x128xf32>
    %6 = arith.addf %3, %5 : vector<32x128xf32>
    %cst_5 = arith.constant 0.000000e+00 : f32
    %7 = vector.broadcast %cst_5 : f32 to vector<32x128xf32>
    %8 = arith.maximumf %6, %7 : vector<32x128xf32>
    %9 = arith.truncf %8 : vector<32x128xf32> to vector<32x128xbf16>
    %c0_6 = arith.constant 0 : index
    %c0_7 = arith.constant 0 : index
    %10 = vector.load %arg4[%c0_6, %c0_7] : memref<128x128xbf16, #tpu.memory_space<vmem>>, vector<128x128xbf16>
    %cst_8 = arith.constant dense<0.000000e+00> : vector<32x128xf32>
    %11 = tpu.matmul %9, %10, %cst_8 {dimension_numbers = #tpu.dot_dimension_numbers<[1], [0], [0], [1], [0, 0, 1, 1], [], []>} : vector<32x128xbf16>, vector<128x128xbf16>, vector<32x128xf32> -> vector<32x128xf32>
    %c0_9 = arith.constant 0 : index
    %c0_10 = arith.constant 0 : index
    %12 = vector.load %arg5[%c0_9, %c0_10] : memref<1x128xf32, #tpu.memory_space<vmem>>, vector<1x128xf32>
    %13 = vector.broadcast %12 : vector<1x128xf32> to vector<32x128xf32>
    %14 = arith.addf %11, %13 : vector<32x128xf32>
    %cst_11 = arith.constant dense<0xFF800000> : vector<32xf32>
    %15 = vector.multi_reduction <maximumf>, %14, %cst_11 [1] : vector<32x128xf32> to vector<32xf32>
    %16 = vector.shape_cast %15 : vector<32xf32> to vector<32x1xf32>
    %17 = vector.broadcast %16 : vector<32x1xf32> to vector<32x128xf32>
    %18 = arith.subf %14, %17 : vector<32x128xf32>
    %19 = math.exp %18 : vector<32x128xf32>
    %cst_12 = arith.constant dense<0.000000e+00> : vector<32xf32>
    %20 = vector.multi_reduction <add>, %19, %cst_12 [1] : vector<32x128xf32> to vector<32xf32>
    %21 = vector.shape_cast %20 : vector<32xf32> to vector<32x1xf32>
    %22 = tpu.reciprocal %21 : vector<32x1xf32> -> vector<32x1xf32>
    %23 = vector.broadcast %22 : vector<32x1xf32> to vector<32x128xf32>
    %24 = arith.mulf %19, %23 : vector<32x128xf32>
    %c0_13 = arith.constant 0 : index
    %c0_14 = arith.constant 0 : index
    %25 = vector.load %arg6[%c0_13, %c0_14] : memref<32x128xf32, #tpu.memory_space<vmem>>, vector<32x128xf32>
    tpu.vector_store %arg6[%c0_13, %c0_14], %24 {strides = array<i32>} : memref<32x128xf32, #tpu.memory_space<vmem>>, vector<32x128xf32>,
    return
  }
  func.func @transform_0(%arg0: i32) -> (i32, i32) {
    %c0_i32 = arith.constant 0 : i32
    %c0_i32_0 = arith.constant 0 : i32
    return %arg0, %c0_i32 : i32, i32
  }
  func.func @transform_1(%arg0: i32) -> (i32, i32) {
    %c0_i32 = arith.constant 0 : i32
    %c0_i32_0 = arith.constant 0 : i32
    %c0_i32_1 = arith.constant 0 : i32
    return %c0_i32, %c0_i32_0 : i32, i32
  }
  func.func @transform_2(%arg0: i32) -> (i32, i32) {
    %c0_i32 = arith.constant 0 : i32
    %c0_i32_0 = arith.constant 0 : i32
    %c0_i32_1 = arith.constant 0 : i32
    return %c0_i32, %c0_i32_0 : i32, i32
  }
  func.func @transform_3(%arg0: i32) -> (i32, i32) {
    %c0_i32 = arith.constant 0 : i32
    %c0_i32_0 = arith.constant 0 : i32
    %c0_i32_1 = arith.constant 0 : i32
    return %c0_i32, %c0_i32_0 : i32, i32
  }
  func.func @transform_4(%arg0: i32) -> (i32, i32) {
    %c0_i32 = arith.constant 0 : i32
    %c0_i32_0 = arith.constant 0 : i32
    %c0_i32_1 = arith.constant 0 : i32
    return %c0_i32, %c0_i32_0 : i32, i32
  }
  func.func @transform_5(%arg0: i32) -> (i32, i32) {
    %c0_i32 = arith.constant 0 : i32
    %c0_i32_0 = arith.constant 0 : i32
    return %arg0, %c0_i32 : i32, i32
  }
}

module attributes {stable_mosaic.version = 11 : i64} {
  func.func @mlp_softmax_kernel(%arg0: i32, %arg1: memref<32x256xf32, #tpu.memory_space<vmem>>, %arg2: memref<256x128xbf16, #tpu.memory_space<vmem>>, %arg3: memref<1x128xf32, #tpu.memory_space<vmem>>, %arg4: memref<128x128xbf16, #tpu.memory_space<vmem>>, %arg5: memref<1x128xf32, #tpu.memory_space<vmem>>, %arg6: memref<32x128xf32, #tpu.memory_space<vmem>>) attributes {dimension_semantics = [#tpu.dimension_semantics<parallel>], iteration_bounds = array<i64: 2>, scalar_prefetch = 0 : i64, scratch_operands = 0 : i64, tpu.core_type = #tpu.core_type<tc>, window_params = [{transform_indices = @transform_0, window_bounds = array<i64: 32, 256>}, {pipeline_mode = #tpu.pipeline_mode<synchronous>, transform_indices = @transform_1, window_bounds = array<i64: 256, 128>}, {pipeline_mode = #tpu.pipeline_mode<synchronous>, transform_indices = @transform_2, window_bounds = array<i64: 1, 128>}, {pipeline_mode = #tpu.pipeline_mode<synchronous>, transform_indices = @transform_3, window_bounds = array<i64: 128, 128>}, {pipeline_mode = #tpu.pipeline_mode<synchronous>, transform_indices = @transform_4, window_bounds = array<i64: 1, 128>}, {transform_indices = @transform_5, window_bounds = array<i64: 32, 128>}]} {
    %c0 = arith.constant 0 : index
    %c0_0 = arith.constant 0 : index
    %0 = vector.load %arg1[%c0, %c0_0] : memref<32x256xf32, #tpu.memory_space<vmem>>, vector<32x256xf32>
    %1 = arith.truncf %0 : vector<32x256xf32> to vector<32x256xbf16>
    %c0_1 = arith.constant 0 : index
    %c0_2 = arith.constant 0 : index
    %2 = vector.load %arg2[%c0_1, %c0_2] : memref<256x128xbf16, #tpu.memory_space<vmem>>, vector<256x128xbf16>
    %cst = arith.constant dense<0.000000e+00> : vector<32x128xf32>
    %3 = tpu.matmul %1, %2, %cst {dimension_numbers = #tpu.dot_dimension_numbers<[1], [0], [0], [1], [0, 0, 1, 1], [], []>} : vector<32x256xbf16>, vector<256x128xbf16>, vector<32x128xf32> -> vector<32x128xf32>
    %c0_3 = arith.constant 0 : index
    %c0_4 = arith.constant 0 : index
    %4 = vector.load %arg3[%c0_3, %c0_4] : memref<1x128xf32, #tpu.memory_space<vmem>>, vector<1x128xf32>
    %5 = vector.broadcast %4 : vector<1x128xf32> to vector<32x128xf32>
    %6 = arith.addf %3, %5 : vector<32x128xf32>
    %cst_5 = arith.constant 0.000000e+00 : f32
    %7 = vector.broadcast %cst_5 : f32 to vector<32x128xf32>
    %8 = arith.maximumf %6, %7 : vector<32x128xf32>
    %9 = arith.truncf %8 : vector<32x128xf32> to vector<32x128xbf16>
    %c0_6 = arith.constant 0 : index
    %c0_7 = arith.constant 0 : index
    %10 = vector.load %arg4[%c0_6, %c0_7] : memref<128x128xbf16, #tpu.memory_space<vmem>>, vector<128x128xbf16>
    %cst_8 = arith.constant dense<0.000000e+00> : vector<32x128xf32>
    %11 = tpu.matmul %9, %10, %cst_8 {dimension_numbers = #tpu.dot_dimension_numbers<[1], [0], [0], [1], [0, 0, 1, 1], [], []>} : vector<32x128xbf16>, vector<128x128xbf16>, vector<32x128xf32> -> vector<32x128xf32>
    %c0_9 = arith.constant 0 : index
    %c0_10 = arith.constant 0 : index
    %12 = vector.load %arg5[%c0_9, %c0_10] : memref<1x128xf32, #tpu.memory_space<vmem>>, vector<1x128xf32>
    %13 = vector.broadcast %12 : vector<1x128xf32> to vector<32x128xf32>
    %14 = arith.addf %11, %13 : vector<32x128xf32>
    %cst_11 = arith.constant dense<0xFF800000> : vector<32xf32>
    %15 = vector.multi_reduction <maximumf>, %14, %cst_11 [1] : vector<32x128xf32> to vector<32xf32>
    %16 = vector.shape_cast %15 : vector<32xf32> to vector<32x1xf32>
    %17 = vector.broadcast %16 : vector<32x1xf32> to vector<32x128xf32>
    %18 = arith.subf %14, %17 : vector<32x128xf32>
    %19 = math.exp %18 : vector<32x128xf32>
    %cst_12 = arith.constant dense<0.000000e+00> : vector<32xf32>
    %20 = vector.multi_reduction <add>, %19, %cst_12 [1] : vector<32x128xf32> to vector<32xf32>
    %21 = vector.shape_cast %20 : vector<32xf32> to vector<32x1xf32>
    %22 = tpu.reciprocal %21 : vector<32x1xf32> -> vector<32x1xf32>
    %23 = vector.broadcast %22 : vector<32x1xf32> to vector<32x128xf32>
    %24 = arith.mulf %19, %23 : vector<32x128xf32>
    %c0_13 = arith.constant 0 : index
    %c0_14 = arith.constant 0 : index
    %25 = vector.load %arg6[%c0_13, %c0_14] : memref<32x128xf32, #tpu.memory_space<vmem>>, vector<32x128xf32>
    tpu.vector_store %arg6[%c0_13, %c0_14], %24 {strides = array<i32>} : memref<32x128xf32, #tpu.memory_space<vmem>>, vector<32x128xf32>,
    return
  }
  func.func @transform_0(%arg0: i32) -> (i32, i32) {
    %c0_i32 = arith.constant 0 : i32
    %c0_i32_0 = arith.constant 0 : i32
    return %arg0, %c0_i32 : i32, i32
  }
  func.func @transform_1(%arg0: i32) -> (i32, i32) {
    %c0_i32 = arith.constant 0 : i32
    %c0_i32_0 = arith.constant 0 : i32
    %c0_i32_1 = arith.constant 0 : i32
    return %c0_i32, %c0_i32_0 : i32, i32
  }
  func.func @transform_2(%arg0: i32) -> (i32, i32) {
    %c0_i32 = arith.constant 0 : i32
    %c0_i32_0 = arith.constant 0 : i32
    %c0_i32_1 = arith.constant 0 : i32
    return %c0_i32, %c0_i32_0 : i32, i32
  }
  func.func @transform_3(%arg0: i32) -> (i32, i32) {
    %c0_i32 = arith.constant 0 : i32
    %c0_i32_0 = arith.constant 0 : i32
    %c0_i32_1 = arith.constant 0 : i32
    return %c0_i32, %c0_i32_0 : i32, i32
  }
  func.func @transform_4(%arg0: i32) -> (i32, i32) {
    %c0_i32 = arith.constant 0 : i32
    %c0_i32_0 = arith.constant 0 : i32
    %c0_i32_1 = arith.constant 0 : i32
    return %c0_i32, %c0_i32_0 : i32, i32
  }
  func.func @transform_5(%arg0: i32) -> (i32, i32) {
    %c0_i32 = arith.constant 0 : i32
    %c0_i32_0 = arith.constant 0 : i32
    return %arg0, %c0_i32 : i32, i32
  }
}

</mosaic_0001>

<llo_original>
// kernel: tpu_custom_call.1
$region0: #{tpu_custom_call.1}
  #allocation0 [shape = 'u32[]', space=smem, size = 0x4, offset = 0x4, fixed_abs, tag = 'smem constant byte address 0x4 - core index']
  #allocation1 [shape = 'u32[144,128]{1,0:T(1,128)}', space=vmem, size = 0x12000, scoped, tag = 'internal scratch']
  %s0 = inlined_call_operand.hbm [shape: f32[64,256], index: 0, kind: input, shape index: {}]
  %s1 = inlined_call_operand.hbm [shape: bf16[256,128], index: 1, kind: input, shape index: {}]
  %s2 = inlined_call_operand.vmem [shape: f32[1,128], index: 2, kind: input, shape index: {}]
  %s3 = inlined_call_operand.hbm [shape: bf16[128,128], index: 3, kind: input, shape index: {}]
  %s4 = inlined_call_operand.vmem [shape: f32[1,128], index: 4, kind: input, shape index: {}]
  %s5 = inlined_call_operand.hbm [shape: f32[64,128], index: 5, kind: output, shape index: {}]
  %s6 = sld [smem:[#allocation0]]
  $region65: #{tpu_custom_call.1} parent=0
    _
  %s8 = ssub.s32 1, %s6
  %s9 = scalar_select 0, %s8, %s6
  $region1: #{tpu_custom_call.1} parent=0
    #allocation2 [shape = 'u8[65536]{0}', space=vmem, size = 0x10000, scoped, tag = 'input window, operand 0']
    #allocation3 [shape = 's32[2]{0}', space=sflag, size = 0x8, scoped, tag = 'scoped memory for tpu_custom_call.1']
    #allocation4 [shape = 's32[2]{0}', space=sflag, size = 0x8, scoped, tag = 'scoped memory for tpu_custom_call.1']
    #allocation5 [shape = 'u8[65536]{0}', space=vmem, size = 0x10000, scoped, tag = 'input window, operand 1, single buffered']
    #allocation6 [shape = 's32[1]{0}', space=sflag, size = 0x4, scoped, tag = 'scoped memory for tpu_custom_call.1']
    #allocation7 [shape = 'u8[32768]{0}', space=vmem, size = 0x8000, scoped, tag = 'input window, operand 3, single buffered']
    #allocation8 [shape = 'u8[32768]{0}', space=vmem, size = 0x8000, scoped, tag = 'output window, operand 0']
    %10 = vsyncpa [#allocation3], 0
    %s11 = scalar_lea.sflag [#allocation3], 1
    %12 = vsyncpa %s11, 0
    %13 = vsyncpa [#allocation6], 0
    %14 = vsyncpa [#allocation4], 0
    %s15 = scalar_lea.sflag [#allocation4], 1
    %16 = vsyncpa %s15, 0
    loop: start=0, step=1, limit=4
    $region2: #{tpu_custom_call.1} parent=1 // loop_pre_header
      _
    $region3: #{tpu_custom_call.1} parent=1 // loop_header
      %s18 = sphi 0, %s22
      %p19 = scmp.ge.s32.totalorder %s18, 4
      %s28 = sphi 0, %s30
      %s31 = sphi 0, %s28
      %s32 = sphi 0, %s31
      %s48 = sphi 0, %s32
      %s52 = sphi 0, %s52
      %s54 = sphi 0, %s52
      %s55 = sphi 0, %s54
      %s69 = sphi 0, %s55
      %s73 = sphi 0, %s73
      %s75 = sphi 0, %s73
      %s76 = sphi 0, %s75
      %s90 = sphi 0, %s76
      %s94 = sphi 0, %s94
      %s96 = sphi 0, %s94
      %s97 = sphi 0, %s96
      %s111 = sphi 0, %s97
      %s115 = sphi 0, %s115
      %s117 = sphi 0, %s115
      %s118 = sphi 0, %s117
      %s132 = sphi 0, %s118
      %s138 = sphi 0, %s140
      %s141 = sphi 0, %s138
      %s142 = sphi 0, %s141
      %s158 = sphi 0, %s142
    $region4: #{tpu_custom_call.1} parent=1 // loop_header_branch
      %21 = sbr.rel (%p19) target = $region8
    $region5: #{tpu_custom_call.1} parent=1 // loop_body
      %s23 = ssub.s32 %s18, 1
      %s24 = ssub.s32 %s18, 2
      %s25 = sadd.s32 %s18, 1
      %s26 = ssub.s32 %s18, %s25
      %p27 = scmp.eq.s32.totalorder %s26, 0
      %s29 = sadd.s32 %s28, 1
      %s30 = scalar_select %p27, %s28, %s29
      %p33 = pneg %p27
      %p34 = scmp.eq.s32.totalorder %s18, 1
      %p35 = por %p33, %p34
      %p36 = scmp.ne.s32.totalorder %s28, %s31
      %p37 = scmp.eq.s32.totalorder %s18, 0
      %p38 = por %p36, %p37
      %p39 = scmp.ne.s32.totalorder %s28, %s31
      %p40 = scmp.eq.s32.totalorder %s23, 1
      %p41 = por %p39, %p40
      %p42 = scmp.ne.s32.totalorder %s31, %s32
      %p43 = scmp.eq.s32.totalorder %s23, 0
      %p44 = por %p42, %p43
      %p45 = scmp.ne.s32.totalorder %s31, %s32
      %p46 = scmp.eq.s32.totalorder %s24, 1
      %p47 = por %p45, %p46
      %p49 = scmp.ne.s32.totalorder %s32, %s48
      %p50 = scmp.eq.s32.totalorder %s24, 0
      %p51 = por %p49, %p50
      %s53 = sadd.s32 %s52, 1
      %p56 = scmp.eq.s32.totalorder %s18, 1
      %p57 = scmp.ne.s32.totalorder %s52, %s54
      %p58 = scmp.eq.s32.totalorder %s18, 0
      %p59 = por %p57, %p58
      %p60 = scmp.ne.s32.totalorder %s52, %s54
      %p61 = scmp.eq.s32.totalorder %s23, 1
      %p62 = por %p60, %p61
      %p63 = scmp.ne.s32.totalorder %s54, %s55
      %p64 = scmp.eq.s32.totalorder %s23, 0
      %p65 = por %p63, %p64
      %p66 = scmp.ne.s32.totalorder %s54, %s55
      %p67 = scmp.eq.s32.totalorder %s24, 1
      %p68 = por %p66, %p67
      %p70 = scmp.ne.s32.totalorder %s55, %s69
      %p71 = scmp.eq.s32.totalorder %s24, 0
      %p72 = por %p70, %p71
      %s74 = sadd.s32 %s73, 1
      %p77 = scmp.eq.s32.totalorder %s18, 1
      %p78 = scmp.ne.s32.totalorder %s73, %s75
      %p79 = scmp.eq.s32.totalorder %s18, 0
      %p80 = por %p78, %p79
      %p81 = scmp.ne.s32.totalorder %s73, %s75
      %p82 = scmp.eq.s32.totalorder %s23, 1
      %p83 = por %p81, %p82
      %p84 = scmp.ne.s32.totalorder %s75, %s76
      %p85 = scmp.eq.s32.totalorder %s23, 0
      %p86 = por %p84, %p85
      %p87 = scmp.ne.s32.totalorder %s75, %s76
      %p88 = scmp.eq.s32.totalorder %s24, 1
      %p89 = por %p87, %p88
      %p91 = scmp.ne.s32.totalorder %s76, %s90
      %p92 = scmp.eq.s32.totalorder %s24, 0
      %p93 = por %p91, %p92
      %s95 = sadd.s32 %s94, 1
      %p98 = scmp.eq.s32.totalorder %s18, 1
      %p99 = scmp.ne.s32.totalorder %s94, %s96
      %p100 = scmp.eq.s32.totalorder %s18, 0
      %p101 = por %p99, %p100
      %p102 = scmp.ne.s32.totalorder %s94, %s96
      %p103 = scmp.eq.s32.totalorder %s23, 1
      %p104 = por %p102, %p103
      %p105 = scmp.ne.s32.totalorder %s96, %s97
      %p106 = scmp.eq.s32.totalorder %s23, 0
      %p107 = por %p105, %p106
      %p108 = scmp.ne.s32.totalorder %s96, %s97
      %p109 = scmp.eq.s32.totalorder %s24, 1
      %p110 = por %p108, %p109
      %p112 = scmp.ne.s32.totalorder %s97, %s111
      %p113 = scmp.eq.s32.totalorder %s24, 0
      %p114 = por %p112, %p113
      %s116 = sadd.s32 %s115, 1
      %p119 = scmp.eq.s32.totalorder %s18, 1
      %p120 = scmp.ne.s32.totalorder %s115, %s117
      %p121 = scmp.eq.s32.totalorder %s18, 0
      %p122 = por %p120, %p121
      %p123 = scmp.ne.s32.totalorder %s115, %s117
      %p124 = scmp.eq.s32.totalorder %s23, 1
      %p125 = por %p123, %p124
      %p126 = scmp.ne.s32.totalorder %s117, %s118
      %p127 = scmp.eq.s32.totalorder %s23, 0
      %p128 = por %p126, %p127
      %p129 = scmp.ne.s32.totalorder %s117, %s118
      %p130 = scmp.eq.s32.totalorder %s24, 1
      %p131 = por %p129, %p130
      %p133 = scmp.ne.s32.totalorder %s118, %s132
      %p134 = scmp.eq.s32.totalorder %s24, 0
      %p135 = por %p133, %p134
      %s136 = ssub.s32 %s18, %s25
      %p137 = scmp.eq.s32.totalorder %s136, 0
      %s139 = sadd.s32 %s138, 1
      %s140 = scalar_select %p137, %s138, %s139
      %p143 = pneg %p137
      %p144 = scmp.eq.s32.totalorder %s18, 1
      %p145 = por %p143, %p144
      %p146 = scmp.ne.s32.totalorder %s138, %s141
      %p147 = scmp.eq.s32.totalorder %s18, 0
      %p148 = por %p146, %p147
      %p149 = scmp.ne.s32.totalorder %s138, %s141
      %p150 = scmp.eq.s32.totalorder %s23, 1
      %p151 = por %p149, %p150
      %p152 = scmp.ne.s32.totalorder %s141, %s142
      %p153 = scmp.eq.s32.totalorder %s23, 0
      %p154 = por %p152, %p153
      %p155 = scmp.ne.s32.totalorder %s141, %s142
      %p156 = scmp.eq.s32.totalorder %s24, 1
      %p157 = por %p155, %p156
      %p159 = scmp.ne.s32.totalorder %s142, %s158
      %p160 = scmp.eq.s32.totalorder %s24, 0
      %p161 = por %p159, %p160
      %p162 = scmp.le.s32.totalorder 1, %s18
      %p163 = scmp.lt.s32.totalorder %s18, 3
      %p164 = pnand %p162, %p163
      %p165 = pneg %p164
      // Predicated region
      $region9: #{tpu_custom_call.1} parent=5 // pred_check
        _
      $region10: #{tpu_custom_call.1} parent=5 // pred_check_branch
        %167 = sbr.rel (%p164) target = $region12
      $region11: #{tpu_custom_call.1} parent=5 // pred_region
        %s168 = ssub.s32 %s18, 1
        // Predicated region
        $region13: #{tpu_custom_call.1} parent=11 // pred_check
          %p169 = pneg %p65
        $region14: #{tpu_custom_call.1} parent=11 // pred_check_branch
          %171 = sbr.rel (%p169) target = $region16
        $region15: #{tpu_custom_call.1} parent=11 // pred_region
          %s173 = ssub.s32 2048, 2048
          %174 = vsyncadd [#allocation6], %s173
          %s175 = sshll.u32 [#allocation5], 4
          %s176 = int_to_ptr.vmem [resolvable:$true] %s175
          %181 = dma.hbm_to_vmem [thread:$0]  %s1, 2048, %s176, [#allocation6], 64, 64, 4
        $region16: #{tpu_custom_call.1} parent=11 // pred_fallthru
          _
        // Predicated region
        $region17: #{tpu_custom_call.1} parent=11 // pred_check
          %p182 = pneg %p86
        $region18: #{tpu_custom_call.1} parent=11 // pred_check_branch
          %184 = sbr.rel (%p182) target = $region20
        $region19: #{tpu_custom_call.1} parent=11 // pred_region
          _
        $region20: #{tpu_custom_call.1} parent=11 // pred_fallthru
          _
        // Predicated region
        $region21: #{tpu_custom_call.1} parent=11 // pred_check
          %p185 = pneg %p107
        $region22: #{tpu_custom_call.1} parent=11 // pred_check_branch
          %187 = sbr.rel (%p185) target = $region24
        $region23: #{tpu_custom_call.1} parent=11 // pred_region
          %s189 = ssub.s32 1024, 1024
          %190 = vsyncadd [#allocation6], %s189
          %s191 = sshll.u32 [#allocation7], 4
          %s192 = int_to_ptr.vmem [resolvable:$true] %s191
          %197 = dma.hbm_to_vmem [thread:$0]  %s3, 1024, %s192, [#allocation6], 64, 64, 4
        $region24: #{tpu_custom_call.1} parent=11 // pred_fallthru
          _
        // Predicated region
        $region25: #{tpu_custom_call.1} parent=11 // pred_check
          %p198 = pneg %p128
        $region26: #{tpu_custom_call.1} parent=11 // pred_check_branch
          %200 = sbr.rel (%p198) target = $region28
        $region27: #{tpu_custom_call.1} parent=11 // pred_region
          _
        $region28: #{tpu_custom_call.1} parent=11 // pred_fallthru
          _
      $region12: #{tpu_custom_call.1} parent=5 // pred_fallthru
        _
      %p201 = scmp.lt.s32.totalorder %s18, 2
      // Predicated region
      $region29: #{tpu_custom_call.1} parent=5 // pred_check
        %p202 = pneg %p201
      $region30: #{tpu_custom_call.1} parent=5 // pred_check_branch
        %204 = sbr.rel (%p202) target = $region32
      $region31: #{tpu_custom_call.1} parent=5 // pred_region
        // Predicated region
        $region33: #{tpu_custom_call.1} parent=31 // pred_check
          %p205 = pneg %p38
        $region34: #{tpu_custom_call.1} parent=31 // pred_check_branch
          %207 = sbr.rel (%p205) target = $region36
        $region35: #{tpu_custom_call.1} parent=31 // pred_region
          %s208 = sand.u32 %s28, 1
          %s209 = scalar_lea.sflag [#allocation3], %s208
          %s210 = sand.u32 %s28, 1
          %s211 = smul.addr %s210, 64
          %s212 = scalar_lea.vmem [#allocation2], %s211
          %s213 = smul.u32 4, %s18
          %s215 = ssub.s32 1024, 1024
          %216 = vsyncadd %s209, %s215
          %s217 = smul.addr %s213, 2
          %s218 = smul.addr %s217, 128
          %s219 = scalar_lea.hbm %s0, %s218
          %s220 = sshll.u32 %s212, 4
          %s221 = int_to_ptr.vmem [resolvable:$true] %s220
          %226 = dma.hbm_to_vmem [thread:$0]  %s219, 1024, %s221, %s209, 256, 256, 16
        $region36: #{tpu_custom_call.1} parent=31 // pred_fallthru
          _
      $region32: #{tpu_custom_call.1} parent=5 // pred_fallthru
        _
      %p227 = scmp.le.s32.totalorder 1, %s18
      %p228 = scmp.lt.s32.totalorder %s18, 3
      %p229 = pnand %p227, %p228
      %p230 = pneg %p229
      // Predicated region
      $region37: #{tpu_custom_call.1} parent=5 // pred_check
        _
      $region38: #{tpu_custom_call.1} parent=5 // pred_check_branch
        %232 = sbr.rel (%p229) target = $region40
      $region39: #{tpu_custom_call.1} parent=5 // pred_region
        %s233 = ssub.s32 %s18, 1
        %s234 = sand.u32 %s31, 1
        %s235 = scalar_lea.sflag [#allocation3], %s234
        %s236 = sand.u32 %s31, 1
        %s237 = smul.addr %s236, 64
        %s238 = scalar_lea.vmem [#allocation2], %s237
        // Predicated region
        $region41: #{tpu_custom_call.1} parent=39 // pred_check
          %p239 = pneg %p44
        $region42: #{tpu_custom_call.1} parent=39 // pred_check_branch
          %241 = sbr.rel (%p239) target = $region44
        $region43: #{tpu_custom_call.1} parent=39 // pred_region
          %242 = dma.done %s235, 1024
        $region44: #{tpu_custom_call.1} parent=39 // pred_fallthru
          _
        // Predicated region
        $region45: #{tpu_custom_call.1} parent=39 // pred_check
          %p243 = pneg %p65
        $region46: #{tpu_custom_call.1} parent=39 // pred_check_branch
          %245 = sbr.rel (%p243) target = $region48
        $region47: #{tpu_custom_call.1} parent=39 // pred_region
          %246 = dma.done [#allocation6], 2048
        $region48: #{tpu_custom_call.1} parent=39 // pred_fallthru
          _
        // Predicated region
        $region49: #{tpu_custom_call.1} parent=39 // pred_check
          %p247 = pneg %p107
        $region50: #{tpu_custom_call.1} parent=39 // pred_check_branch
          %249 = sbr.rel (%p247) target = $region52
        $region51: #{tpu_custom_call.1} parent=39 // pred_region
          %250 = dma.done [#allocation6], 1024
        $region52: #{tpu_custom_call.1} parent=39 // pred_fallthru
          _
        %s251 = sand.u32 %s31, 1
        %s252 = scalar_lea.sflag [#allocation3], %s251
        %s253 = sand.u32 %s31, 1
        %s254 = smul.addr %s253, 64
        %s255 = scalar_lea.vmem [#allocation2], %s254
        %p256 = pneg %p44
        %p257 = pneg %p41
        %p258 = pneg %p65
        %p259 = pneg %p62
        %p260 = pneg %p86
        %p261 = pneg %p83
        %p262 = pneg %p107
        %p263 = pneg %p104
        %p264 = pneg %p128
        %p265 = pneg %p125
        %p266 = pneg %p154
        %p267 = pneg %p151
        %s268 = sand.u32 %s141, 1
        %s269 = scalar_lea.sflag [#allocation4], %s268
        %s270 = sand.u32 %s141, 1
        %s271 = smul.addr %s270, 32
        %s272 = scalar_lea.vmem [#allocation8], %s271
        %s273 = smul.u32 4, %s23
        %s274 = smul.u32 4, %s23
        %v276 = vld [vmem:[%s238] sm:$0xff]
        %v277 = vld [vmem:[%s238 + $0x8] sm:$0xff]
        %v278 = vld [vmem:[%s238 + $0x10] sm:$0xff]
        %v279 = vld [vmem:[%s238 + $0x18] sm:$0xff]
        %v280 = vld [vmem:[%s238 + $0x20] sm:$0xff]
        %v281 = vld [vmem:[%s238 + $0x28] sm:$0xff]
        %v282 = vld [vmem:[%s238 + $0x30] sm:$0xff]
        %v283 = vld [vmem:[%s238 + $0x38] sm:$0xff]
        %v284 = vpack.c.bf16 %v278, %v276
        %v285 = vpack.c.bf16 %v279, %v277
        %v286 = vpack.c.bf16 %v282, %v280
        %v287 = vpack.c.bf16 %v283, %v281
        %v288 = vld [vmem:[#allocation5] sm:$0xf]
        %v289 = vld [vmem:[#allocation5 + $0x4] sm:$0xf]
        %v290 = vld [vmem:[#allocation5 + $0x8] sm:$0xf]
        %v291 = vld [vmem:[#allocation5 + $0xc] sm:$0xf]
        %v292 = vld [vmem:[#allocation5 + $0x10] sm:$0xf]
        %v293 = vld [vmem:[#allocation5 + $0x14] sm:$0xf]
        %v294 = vld [vmem:[#allocation5 + $0x18] sm:$0xf]
        %v295 = vld [vmem:[#allocation5 + $0x1c] sm:$0xf]
        %v296 = vld [vmem:[#allocation5 + $0x20] sm:$0xf]
        %v297 = vld [vmem:[#allocation5 + $0x24] sm:$0xf]
        %v298 = vld [vmem:[#allocation5 + $0x28] sm:$0xf]
        %v299 = vld [vmem:[#allocation5 + $0x2c] sm:$0xf]
        %v300 = vld [vmem:[#allocation5 + $0x30] sm:$0xf]
        %v301 = vld [vmem:[#allocation5 + $0x34] sm:$0xf]
        %v302 = vld [vmem:[#allocation5 + $0x38] sm:$0xf]
        %v303 = vld [vmem:[#allocation5 + $0x3c] sm:$0xf]
        %v304 = vld [vmem:[#allocation5 + $0x40] sm:$0xf]
        %v305 = vld [vmem:[#allocation5 + $0x44] sm:$0xf]
        %v306 = vld [vmem:[#allocation5 + $0x48] sm:$0xf]
        %v307 = vld [vmem:[#allocation5 + $0x4c] sm:$0xf]
        %v308 = vld [vmem:[#allocation5 + $0x50] sm:$0xf]
        %v309 = vld [vmem:[#allocation5 + $0x54] sm:$0xf]
        %v310 = vld [vmem:[#allocation5 + $0x58] sm:$0xf]
        %v311 = vld [vmem:[#allocation5 + $0x5c] sm:$0xf]
        %v312 = vld [vmem:[#allocation5 + $0x60] sm:$0xf]
        %v313 = vld [vmem:[#allocation5 + $0x64] sm:$0xf]
        %v314 = vld [vmem:[#allocation5 + $0x68] sm:$0xf]
        %v315 = vld [vmem:[#allocation5 + $0x6c] sm:$0xf]
        %v316 = vld [vmem:[#allocation5 + $0x70] sm:$0xf]
        %v317 = vld [vmem:[#allocation5 + $0x74] sm:$0xf]
        %v318 = vld [vmem:[#allocation5 + $0x78] sm:$0xf]
        %v319 = vld [vmem:[#allocation5 + $0x7c] sm:$0xf]
        %v320 = vld [vmem:[%s2] sm:$0x1]
        %v322 = vlaneseq
        %v323 = vshrl.u32 %v322, 7
        %v324 = vsub.s32 0, %v323
        %v325 = vrot.slane %v320, %v324
        %v359 = vunpack.c.l.b16 %v288
        %v360 = vunpack.c.l.b16 %v289
        %v361 = vunpack.c.l.b16 %v290
        %v362 = vunpack.c.l.b16 %v291
        %v363 = vunpack.c.l.b16 %v292
        %v364 = vunpack.c.l.b16 %v293
        %v365 = vunpack.c.l.b16 %v294
        %v366 = vunpack.c.l.b16 %v295
        %v367 = vunpack.c.l.b16 %v296
        %v368 = vunpack.c.l.b16 %v297
        %v369 = vunpack.c.l.b16 %v298
        %v370 = vunpack.c.l.b16 %v299
        %v371 = vunpack.c.l.b16 %v300
        %v372 = vunpack.c.l.b16 %v301
        %v373 = vunpack.c.l.b16 %v302
        %v374 = vunpack.c.l.b16 %v303
        %v375 = vunpack.c.l.b16 %v304
        %v376 = vunpack.c.l.b16 %v305
        %v377 = vunpack.c.l.b16 %v306
        %v378 = vunpack.c.l.b16 %v307
        %v379 = vunpack.c.l.b16 %v308
        %v380 = vunpack.c.l.b16 %v309
        %v381 = vunpack.c.l.b16 %v310
        %v382 = vunpack.c.l.b16 %v311
        %v383 = vunpack.c.l.b16 %v312
        %v384 = vunpack.c.l.b16 %v313
        %v385 = vunpack.c.l.b16 %v314
        %v386 = vunpack.c.l.b16 %v315
        %v387 = vunpack.c.l.b16 %v316
        %v388 = vunpack.c.l.b16 %v317
        %v389 = vunpack.c.l.b16 %v318
        %v390 = vunpack.c.l.b16 %v319
        %v391 = vpack.c.b16 %v360, %v359
        %v392 = vpack.c.b16 %v362, %v361
        %v393 = vpack.c.b16 %v364, %v363
        %v394 = vpack.c.b16 %v366, %v365
        %v395 = vpack.c.b16 %v368, %v367
        %v396 = vpack.c.b16 %v370, %v369
        %v397 = vpack.c.b16 %v372, %v371
        %v398 = vpack.c.b16 %v374, %v373
        %v399 = vpack.c.b16 %v376, %v375
        %v400 = vpack.c.b16 %v378, %v377
        %v401 = vpack.c.b16 %v380, %v379
        %v402 = vpack.c.b16 %v382, %v381
        %v403 = vpack.c.b16 %v384, %v383
        %v404 = vpack.c.b16 %v386, %v385
        %v405 = vpack.c.b16 %v388, %v387
        %v406 = vpack.c.b16 %v390, %v389
        %423 = vmatprep.subr.bf16.mxu0 0
        %424 = vmatpush1.bf16.msra.mxu0 %v398
        %425 = vmatprep.subr.bf16.mxu0 0
        %426 = vmatpush1.bf16.msra.mxu0 %v397
        %427 = vmatprep.subr.bf16.mxu0 0
        %428 = vmatpush1.bf16.msra.mxu0 %v396
        %429 = vmatprep.subr.bf16.mxu0 0
        %430 = vmatpush1.bf16.msra.mxu0 %v395
        %431 = vmatprep.subr.bf16.mxu0 0
        %432 = vmatpush1.bf16.msra.mxu0 %v394
        %433 = vmatprep.subr.bf16.mxu0 0
        %434 = vmatpush1.bf16.msra.mxu0 %v393
        %435 = vmatprep.subr.bf16.mxu0 0
        %436 = vmatpush1.bf16.msra.mxu0 %v392
        %437 = vmatprep.subr.bf16.mxu0 0
        %438 = vmatpush1.bf16.msra.mxu0 %v391
        %439 = vmatprep.subr.bf16.mxu0 0
        %440 = vmatpush2.bf16.msra.mxu0 %v406
        %441 = vmatprep.subr.bf16.mxu0 0
        %442 = vmatpush2.bf16.msra.mxu0 %v405
        %443 = vmatprep.subr.bf16.mxu0 0
        %444 = vmatpush2.bf16.msra.mxu0 %v404
        %445 = vmatprep.subr.bf16.mxu0 0
        %446 = vmatpush2.bf16.msra.mxu0 %v403
        %447 = vmatprep.subr.bf16.mxu0 0
        %448 = vmatpush2.bf16.msra.mxu0 %v402
        %449 = vmatprep.subr.bf16.mxu0 0
        %450 = vmatpush2.bf16.msra.mxu0 %v401
        %451 = vmatprep.subr.bf16.mxu0 0
        %452 = vmatpush2.bf16.msra.mxu0 %v400
        %453 = vmatprep.subr.bf16.mxu0 0
        %454 = vmatpush2.bf16.msra.mxu0 %v399
        %455 = vmatprep.mubr.bf16.mxu0 %v285
        %456 = vmatmul.mubr.bf16.gmra.mxu0 %v284
        %v457 = vpop.f32.mrf.mxu0
        %v458 = vadd.f32 %v325, %v457
        %v459 = vpop.f32.mrf.mxu0
        %v460 = vpop.f32.mrf.mxu0
        %v461 = vadd.f32 %v325, %v460
        %v462 = vpop.f32.mrf.mxu0
        %463 = vmatprep.mubr.bf16.mxu0 %v287
        %464 = vmatmul.mubr.bf16.gmra.mxu0 %v286
        %v465 = vpop.f32.mrf.mxu0
        %v466 = vadd.f32 %v325, %v465
        %v467 = vpop.f32.mrf.mxu0
        %v468 = vpop.f32.mrf.mxu0
        %v469 = vadd.f32 %v325, %v468
        %v470 = vpop.f32.mrf.mxu0
        %471 = vdwg.mxu0
        %v472 = vmax.f32 %v458, 0.0
        %v473 = vmax.f32 %v461, 0.0
        %v474 = vmax.f32 %v466, 0.0
        %v475 = vmax.f32 %v469, 0.0
        %v476 = vpack.c.bf16 %v473, %v472
        %v477 = vpack.c.bf16 %v475, %v474
        %v478 = vld [vmem:[#allocation7] sm:$0xf]
        %v479 = vld [vmem:[#allocation7 + $0x4] sm:$0xf]
        %v480 = vld [vmem:[#allocation7 + $0x8] sm:$0xf]
        %v481 = vld [vmem:[#allocation7 + $0xc] sm:$0xf]
        %v482 = vld [vmem:[#allocation7 + $0x10] sm:$0xf]
        %v483 = vld [vmem:[#allocation7 + $0x14] sm:$0xf]
        %v484 = vld [vmem:[#allocation7 + $0x18] sm:$0xf]
        %v485 = vld [vmem:[#allocation7 + $0x1c] sm:$0xf]
        %v486 = vld [vmem:[#allocation7 + $0x20] sm:$0xf]
        %v487 = vld [vmem:[#allocation7 + $0x24] sm:$0xf]
        %v488 = vld [vmem:[#allocation7 + $0x28] sm:$0xf]
        %v489 = vld [vmem:[#allocation7 + $0x2c] sm:$0xf]
        %v490 = vld [vmem:[#allocation7 + $0x30] sm:$0xf]
        %v491 = vld [vmem:[#allocation7 + $0x34] sm:$0xf]
        %v492 = vld [vmem:[#allocation7 + $0x38] sm:$0xf]
        %v493 = vld [vmem:[#allocation7 + $0x3c] sm:$0xf]
        %v494 = vld [vmem:[%s4] sm:$0x1]
        %v496 = vlaneseq
        %v497 = vshrl.u32 %v496, 7
        %v498 = vsub.s32 0, %v497
        %v499 = vrot.slane %v494, %v498
        %v517 = vunpack.c.l.b16 %v478
        %v518 = vunpack.c.l.b16 %v479
        %v519 = vunpack.c.l.b16 %v480
        %v520 = vunpack.c.l.b16 %v481
        %v521 = vunpack.c.l.b16 %v482
        %v522 = vunpack.c.l.b16 %v483
        %v523 = vunpack.c.l.b16 %v484
        %v524 = vunpack.c.l.b16 %v485
        %v525 = vunpack.c.l.b16 %v486
        %v526 = vunpack.c.l.b16 %v487
        %v527 = vunpack.c.l.b16 %v488
        %v528 = vunpack.c.l.b16 %v489
        %v529 = vunpack.c.l.b16 %v490
        %v530 = vunpack.c.l.b16 %v491
        %v531 = vunpack.c.l.b16 %v492
        %v532 = vunpack.c.l.b16 %v493
        %v533 = vpack.c.b16 %v518, %v517
        %v534 = vpack.c.b16 %v520, %v519
        %v535 = vpack.c.b16 %v522, %v521
        %v536 = vpack.c.b16 %v524, %v523
        %v537 = vpack.c.b16 %v526, %v525
        %v538 = vpack.c.b16 %v528, %v527
        %v539 = vpack.c.b16 %v530, %v529
        %v540 = vpack.c.b16 %v532, %v531
        %549 = vmatprep.subr.bf16.mxu0 0
        %550 = vmatpush1.bf16.msra.mxu0 %v540
        %551 = vmatprep.subr.bf16.mxu0 0
        %552 = vmatpush1.bf16.msra.mxu0 %v539
        %553 = vmatprep.subr.bf16.mxu0 0
        %554 = vmatpush1.bf16.msra.mxu0 %v538
        %555 = vmatprep.subr.bf16.mxu0 0
        %556 = vmatpush1.bf16.msra.mxu0 %v537
        %557 = vmatprep.subr.bf16.mxu0 0
        %558 = vmatpush1.bf16.msra.mxu0 %v536
        %559 = vmatprep.subr.bf16.mxu0 0
        %560 = vmatpush1.bf16.msra.mxu0 %v535
        %561 = vmatprep.subr.bf16.mxu0 0
        %562 = vmatpush1.bf16.msra.mxu0 %v534
        %563 = vmatprep.subr.bf16.mxu0 0
        %564 = vmatpush1.bf16.msra.mxu0 %v533
        %565 = vmatprep.subr.bf16.mxu0 0
        %566 = vmatpush2.bf16.msra.mxu0 0
        %567 = vmatprep.subr.bf16.mxu0 0
        %568 = vmatpush2.bf16.msra.mxu0 0
        %569 = vmatprep.subr.bf16.mxu0 0
        %570 = vmatpush2.bf16.msra.mxu0 0
        %571 = vmatprep.subr.bf16.mxu0 0
        %572 = vmatpush2.bf16.msra.mxu0 0
        %573 = vmatprep.subr.bf16.mxu0 0
        %574 = vmatpush2.bf16.msra.mxu0 0
        %575 = vmatprep.subr.bf16.mxu0 0
        %576 = vmatpush2.bf16.msra.mxu0 0
        %577 = vmatprep.subr.bf16.mxu0 0
        %578 = vmatpush2.bf16.msra.mxu0 0
        %579 = vmatprep.subr.bf16.mxu0 0
        %580 = vmatpush2.bf16.msra.mxu0 0
        %581 = vmatprep.mubr.bf16.mxu0 0
        %582 = vmatmul.mubr.bf16.gmra.mxu0 %v476
        %v583 = vpop.f32.mrf.mxu0
        %v584 = vadd.f32 %v499, %v583
        %v585 = vpop.f32.mrf.mxu0
        %v586 = vpop.f32.mrf.mxu0
        %v587 = vadd.f32 %v499, %v586
        %v588 = vpop.f32.mrf.mxu0
        %589 = vmatprep.mubr.bf16.mxu0 0
        %590 = vmatmul.mubr.bf16.gmra.mxu0 %v477
        %v591 = vpop.f32.mrf.mxu0
        %v592 = vadd.f32 %v499, %v591
        %v593 = vpop.f32.mrf.mxu0
        %v594 = vpop.f32.mrf.mxu0
        %v595 = vadd.f32 %v499, %v594
        %v596 = vpop.f32.mrf.mxu0
        %597 = vdwg.mxu0
        %598 = vmax.xlane.f32.xlu0 %v584
        %v599 = vpop.xlane.xlu0 %598
        %600 = vmax.xlane.f32.xlu0 %v587
        %v601 = vpop.xlane.xlu0 %600
        %602 = vmax.xlane.f32.xlu0 %v592
        %v603 = vpop.xlane.xlu0 %602
        %604 = vmax.xlane.f32.xlu0 %v595
        %v605 = vpop.xlane.xlu0 %604
        %v606 = vsub.f32 %v584, %v599
        %v607 = vsub.f32 %v587, %v601
        %v608 = vsub.f32 %v592, %v603
        %v609 = vsub.f32 %v595, %v605
        %v610 = vmul.f32 %v606, 1.442695
        %v611 = vpow.pop %v610
        %v612 = vmul.f32 %v607, 1.442695
        %v613 = vpow.pop %v612
        %v614 = vmul.f32 %v608, 1.442695
        %v615 = vpow.pop %v614
        %v616 = vmul.f32 %v609, 1.442695
        %v617 = vpow.pop %v616
        %618 = vadd.xlane.f32.xlu0 %v611
        %v619 = vpop.xlane.xlu0 %618
        %620 = vadd.xlane.f32.xlu0 %v613
        %v621 = vpop.xlane.xlu0 %620
        %622 = vadd.xlane.f32.xlu0 %v615
        %v623 = vpop.xlane.xlu0 %622
        %624 = vadd.xlane.f32.xlu0 %v617
        %v625 = vpop.xlane.xlu0 %624
        %v626 = vrcp.pop %v619
        %v627 = vrcp.pop %v621
        %v628 = vrcp.pop %v623
        %v629 = vrcp.pop %v625
        %v630 = vmul.f32 %v611, %v626
        %v631 = vmul.f32 %v613, %v627
        %v632 = vmul.f32 %v615, %v628
        %v633 = vmul.f32 %v617, %v629
        %634 = vst [vmem:[%s272] sm:$0xff] %v630
        %635 = vst [vmem:[%s272 + $0x8] sm:$0xff] %v631
        %636 = vst [vmem:[%s272 + $0x10] sm:$0xff] %v632
        %637 = vst [vmem:[%s272 + $0x18] sm:$0xff] %v633
        %s638 = sand.u32 %s141, 1
        %s639 = scalar_lea.sflag [#allocation4], %s638
        %s640 = sand.u32 %s141, 1
        %s641 = smul.addr %s640, 32
        %s642 = scalar_lea.vmem [#allocation8], %s641
        // Predicated region
        $region53: #{tpu_custom_call.1} parent=39 // pred_check
          %p643 = pneg %p151
        $region54: #{tpu_custom_call.1} parent=39 // pred_check_branch
          %645 = sbr.rel (%p643) target = $region56
        $region55: #{tpu_custom_call.1} parent=39 // pred_region
          %s646 = smul.u32 4, %s23
          %s648 = ssub.s32 512, 512
          %649 = vsyncadd %s639, %s648
          %s650 = smul.addr %s646, 128
          %s651 = scalar_lea.hbm %s5, %s650
          %s652 = sshll.u32 %s642, 4
          %s653 = int_to_ptr.vmem [resolvable:$true] %s652
          %658 = dma.vmem_to_hbm [thread:$0]  %s653, 512, %s651, %s639, 128, 128, 8
        $region56: #{tpu_custom_call.1} parent=39 // pred_fallthru
          _
      $region40: #{tpu_custom_call.1} parent=5 // pred_fallthru
        _
      %p659 = scmp.le.s32.totalorder 2, %s18
      // Predicated region
      $region57: #{tpu_custom_call.1} parent=5 // pred_check
        %p660 = pneg %p659
      $region58: #{tpu_custom_call.1} parent=5 // pred_check_branch
        %662 = sbr.rel (%p660) target = $region60
      $region59: #{tpu_custom_call.1} parent=5 // pred_region
        %s663 = ssub.s32 %s18, 2
        // Predicated region
        $region61: #{tpu_custom_call.1} parent=59 // pred_check
          %p664 = pneg %p157
        $region62: #{tpu_custom_call.1} parent=59 // pred_check_branch
          %666 = sbr.rel (%p664) target = $region64
        $region63: #{tpu_custom_call.1} parent=59 // pred_region
          %s667 = sand.u32 %s142, 1
          %s668 = scalar_lea.sflag [#allocation4], %s667
          %s669 = sand.u32 %s142, 1
          %s670 = smul.addr %s669, 32
          %s671 = scalar_lea.vmem [#allocation8], %s670
          %672 = dma.done %s668, 512
        $region64: #{tpu_custom_call.1} parent=59 // pred_fallthru
          _
      $region60: #{tpu_custom_call.1} parent=5 // pred_fallthru
        _
    $region6: #{tpu_custom_call.1} parent=1 // loop_footer
      %s22 = sadd.s32 1, %s18
    $region7: #{tpu_custom_call.1} parent=1 // loop_footer_branch
      %17 = sbr.rel target = $region3
    $region8: #{tpu_custom_call.1} parent=1 // loop_exit
      _
    %673 = vsyncpa [#allocation3], 1
    %s674 = scalar_lea.sflag [#allocation3], 1
    %675 = vsyncpa %s674, 1
    %676 = vsyncpa [#allocation6], 1
    %677 = vsyncpa [#allocation4], 1
    %s678 = scalar_lea.sflag [#allocation4], 1
    %679 = vsyncpa %s678, 1

// kernel: tpu_custom_call.1
$region0: #{tpu_custom_call.1}
  #allocation0 [shape = 'u32[]', space=smem, size = 0x4, offset = 0x4, fixed_abs, tag = 'smem constant byte address 0x4 - core index']
  #allocation1 [shape = 'u32[144,128]{1,0:T(1,128)}', space=vmem, size = 0x12000, scoped, tag = 'internal scratch']
  %s0 = inlined_call_operand.hbm [shape: f32[64,256], index: 0, kind: input, shape index: {}]
  %s1 = inlined_call_operand.hbm [shape: bf16[256,128], index: 1, kind: input, shape index: {}]
  %s2 = inlined_call_operand.vmem [shape: f32[1,128], index: 2, kind: input, shape index: {}]
  %s3 = inlined_call_operand.hbm [shape: bf16[128,128], index: 3, kind: input, shape index: {}]
  %s4 = inlined_call_operand.vmem [shape: f32[1,128], index: 4, kind: input, shape index: {}]
  %s5 = inlined_call_operand.hbm [shape: f32[64,128], index: 5, kind: output, shape index: {}]
  %s6 = sld [smem:[#allocation0]]
  $region65: #{tpu_custom_call.1} parent=0
    _
  %s8 = ssub.s32 1, %s6
  %s9 = scalar_select 0, %s8, %s6
  $region1: #{tpu_custom_call.1} parent=0
    #allocation2 [shape = 'u8[65536]{0}', space=vmem, size = 0x10000, scoped, tag = 'input window, operand 0']
    #allocation3 [shape = 's32[2]{0}', space=sflag, size = 0x8, scoped, tag = 'scoped memory for tpu_custom_call.1']
    #allocation4 [shape = 's32[2]{0}', space=sflag, size = 0x8, scoped, tag = 'scoped memory for tpu_custom_call.1']
    #allocation5 [shape = 'u8[65536]{0}', space=vmem, size = 0x10000, scoped, tag = 'input window, operand 1, single buffered']
    #allocation6 [shape = 's32[1]{0}', space=sflag, size = 0x4, scoped, tag = 'scoped memory for tpu_custom_call.1']
    #allocation7 [shape = 'u8[32768]{0}', space=vmem, size = 0x8000, scoped, tag = 'input window, operand 3, single buffered']
    #allocation8 [shape = 'u8[32768]{0}', space=vmem, size = 0x8000, scoped, tag = 'output window, operand 0']
    %10 = vsyncpa [#allocation3], 0
    %s11 = scalar_lea.sflag [#allocation3], 1
    %12 = vsyncpa %s11, 0
    %13 = vsyncpa [#allocation6], 0
    %14 = vsyncpa [#allocation4], 0
    %s15 = scalar_lea.sflag [#allocation4], 1
    %16 = vsyncpa %s15, 0
    loop: start=0, step=1, limit=4
    $region2: #{tpu_custom_call.1} parent=1 // loop_pre_header
      _
    $region3: #{tpu_custom_call.1} parent=1 // loop_header
      %s18 = sphi 0, %s22
      %p19 = scmp.ge.s32.totalorder %s18, 4
      %s28 = sphi 0, %s30
      %s31 = sphi 0, %s28
      %s32 = sphi 0, %s31
      %s48 = sphi 0, %s32
      %s52 = sphi 0, %s52
      %s54 = sphi 0, %s52
      %s55 = sphi 0, %s54
      %s69 = sphi 0, %s55
      %s73 = sphi 0, %s73
      %s75 = sphi 0, %s73
      %s76 = sphi 0, %s75
      %s90 = sphi 0, %s76
      %s94 = sphi 0, %s94
      %s96 = sphi 0, %s94
      %s97 = sphi 0, %s96
      %s111 = sphi 0, %s97
      %s115 = sphi 0, %s115
      %s117 = sphi 0, %s115
      %s118 = sphi 0, %s117
      %s132 = sphi 0, %s118
      %s138 = sphi 0, %s140
      %s141 = sphi 0, %s138
      %s142 = sphi 0, %s141
      %s158 = sphi 0, %s142
    $region4: #{tpu_custom_call.1} parent=1 // loop_header_branch
      %21 = sbr.rel (%p19) target = $region8
    $region5: #{tpu_custom_call.1} parent=1 // loop_body
      %s23 = ssub.s32 %s18, 1
      %s24 = ssub.s32 %s18, 2
      %s25 = sadd.s32 %s18, 1
      %s26 = ssub.s32 %s18, %s25
      %p27 = scmp.eq.s32.totalorder %s26, 0
      %s29 = sadd.s32 %s28, 1
      %s30 = scalar_select %p27, %s28, %s29
      %p33 = pneg %p27
      %p34 = scmp.eq.s32.totalorder %s18, 1
      %p35 = por %p33, %p34
      %p36 = scmp.ne.s32.totalorder %s28, %s31
      %p37 = scmp.eq.s32.totalorder %s18, 0
      %p38 = por %p36, %p37
      %p39 = scmp.ne.s32.totalorder %s28, %s31
      %p40 = scmp.eq.s32.totalorder %s23, 1
      %p41 = por %p39, %p40
      %p42 = scmp.ne.s32.totalorder %s31, %s32
      %p43 = scmp.eq.s32.totalorder %s23, 0
      %p44 = por %p42, %p43
      %p45 = scmp.ne.s32.totalorder %s31, %s32
      %p46 = scmp.eq.s32.totalorder %s24, 1
      %p47 = por %p45, %p46
      %p49 = scmp.ne.s32.totalorder %s32, %s48
      %p50 = scmp.eq.s32.totalorder %s24, 0
      %p51 = por %p49, %p50
      %s53 = sadd.s32 %s52, 1
      %p56 = scmp.eq.s32.totalorder %s18, 1
      %p57 = scmp.ne.s32.totalorder %s52, %s54
      %p58 = scmp.eq.s32.totalorder %s18, 0
      %p59 = por %p57, %p58
      %p60 = scmp.ne.s32.totalorder %s52, %s54
      %p61 = scmp.eq.s32.totalorder %s23, 1
      %p62 = por %p60, %p61
      %p63 = scmp.ne.s32.totalorder %s54, %s55
      %p64 = scmp.eq.s32.totalorder %s23, 0
      %p65 = por %p63, %p64
      %p66 = scmp.ne.s32.totalorder %s54, %s55
      %p67 = scmp.eq.s32.totalorder %s24, 1
      %p68 = por %p66, %p67
      %p70 = scmp.ne.s32.totalorder %s55, %s69
      %p71 = scmp.eq.s32.totalorder %s24, 0
      %p72 = por %p70, %p71
      %s74 = sadd.s32 %s73, 1
      %p77 = scmp.eq.s32.totalorder %s18, 1
      %p78 = scmp.ne.s32.totalorder %s73, %s75
      %p79 = scmp.eq.s32.totalorder %s18, 0
      %p80 = por %p78, %p79
      %p81 = scmp.ne.s32.totalorder %s73, %s75
      %p82 = scmp.eq.s32.totalorder %s23, 1
      %p83 = por %p81, %p82
      %p84 = scmp.ne.s32.totalorder %s75, %s76
      %p85 = scmp.eq.s32.totalorder %s23, 0
      %p86 = por %p84, %p85
      %p87 = scmp.ne.s32.totalorder %s75, %s76
      %p88 = scmp.eq.s32.totalorder %s24, 1
      %p89 = por %p87, %p88
      %p91 = scmp.ne.s32.totalorder %s76, %s90
      %p92 = scmp.eq.s32.totalorder %s24, 0
      %p93 = por %p91, %p92
      %s95 = sadd.s32 %s94, 1
      %p98 = scmp.eq.s32.totalorder %s18, 1
      %p99 = scmp.ne.s32.totalorder %s94, %s96
      %p100 = scmp.eq.s32.totalorder %s18, 0
      %p101 = por %p99, %p100
      %p102 = scmp.ne.s32.totalorder %s94, %s96
      %p103 = scmp.eq.s32.totalorder %s23, 1
      %p104 = por %p102, %p103
      %p105 = scmp.ne.s32.totalorder %s96, %s97
      %p106 = scmp.eq.s32.totalorder %s23, 0
      %p107 = por %p105, %p106
      %p108 = scmp.ne.s32.totalorder %s96, %s97
      %p109 = scmp.eq.s32.totalorder %s24, 1
      %p110 = por %p108, %p109
      %p112 = scmp.ne.s32.totalorder %s97, %s111
      %p113 = scmp.eq.s32.totalorder %s24, 0
      %p114 = por %p112, %p113
      %s116 = sadd.s32 %s115, 1
      %p119 = scmp.eq.s32.totalorder %s18, 1
      %p120 = scmp.ne.s32.totalorder %s115, %s117
      %p121 = scmp.eq.s32.totalorder %s18, 0
      %p122 = por %p120, %p121
      %p123 = scmp.ne.s32.totalorder %s115, %s117
      %p124 = scmp.eq.s32.totalorder %s23, 1
      %p125 = por %p123, %p124
      %p126 = scmp.ne.s32.totalorder %s117, %s118
      %p127 = scmp.eq.s32.totalorder %s23, 0
      %p128 = por %p126, %p127
      %p129 = scmp.ne.s32.totalorder %s117, %s118
      %p130 = scmp.eq.s32.totalorder %s24, 1
      %p131 = por %p129, %p130
      %p133 = scmp.ne.s32.totalorder %s118, %s132
      %p134 = scmp.eq.s32.totalorder %s24, 0
      %p135 = por %p133, %p134
      %s136 = ssub.s32 %s18, %s25
      %p137 = scmp.eq.s32.totalorder %s136, 0
      %s139 = sadd.s32 %s138, 1
      %s140 = scalar_select %p137, %s138, %s139
      %p143 = pneg %p137
      %p144 = scmp.eq.s32.totalorder %s18, 1
      %p145 = por %p143, %p144
      %p146 = scmp.ne.s32.totalorder %s138, %s141
      %p147 = scmp.eq.s32.totalorder %s18, 0
      %p148 = por %p146, %p147
      %p149 = scmp.ne.s32.totalorder %s138, %s141
      %p150 = scmp.eq.s32.totalorder %s23, 1
      %p151 = por %p149, %p150
      %p152 = scmp.ne.s32.totalorder %s141, %s142
      %p153 = scmp.eq.s32.totalorder %s23, 0
      %p154 = por %p152, %p153
      %p155 = scmp.ne.s32.totalorder %s141, %s142
      %p156 = scmp.eq.s32.totalorder %s24, 1
      %p157 = por %p155, %p156
      %p159 = scmp.ne.s32.totalorder %s142, %s158
      %p160 = scmp.eq.s32.totalorder %s24, 0
      %p161 = por %p159, %p160
      %p162 = scmp.le.s32.totalorder 1, %s18
      %p163 = scmp.lt.s32.totalorder %s18, 3
      %p164 = pnand %p162, %p163
      %p165 = pneg %p164
      // Predicated region
      $region9: #{tpu_custom_call.1} parent=5 // pred_check
        _
      $region10: #{tpu_custom_call.1} parent=5 // pred_check_branch
        %167 = sbr.rel (%p164) target = $region12
      $region11: #{tpu_custom_call.1} parent=5 // pred_region
        %s168 = ssub.s32 %s18, 1
        // Predicated region
        $region13: #{tpu_custom_call.1} parent=11 // pred_check
          %p169 = pneg %p65
        $region14: #{tpu_custom_call.1} parent=11 // pred_check_branch
          %171 = sbr.rel (%p169) target = $region16
        $region15: #{tpu_custom_call.1} parent=11 // pred_region
          %s173 = ssub.s32 2048, 2048
          %174 = vsyncadd [#allocation6], %s173
          %s175 = sshll.u32 [#allocation5], 4
          %s176 = int_to_ptr.vmem [resolvable:$true] %s175
          %181 = dma.hbm_to_vmem [thread:$0]  %s1, 2048, %s176, [#allocation6], 64, 64, 4
        $region16: #{tpu_custom_call.1} parent=11 // pred_fallthru
          _
        // Predicated region
        $region17: #{tpu_custom_call.1} parent=11 // pred_check
          %p182 = pneg %p86
        $region18: #{tpu_custom_call.1} parent=11 // pred_check_branch
          %184 = sbr.rel (%p182) target = $region20
        $region19: #{tpu_custom_call.1} parent=11 // pred_region
          _
        $region20: #{tpu_custom_call.1} parent=11 // pred_fallthru
          _
        // Predicated region
        $region21: #{tpu_custom_call.1} parent=11 // pred_check
          %p185 = pneg %p107
        $region22: #{tpu_custom_call.1} parent=11 // pred_check_branch
          %187 = sbr.rel (%p185) target = $region24
        $region23: #{tpu_custom_call.1} parent=11 // pred_region
          %s189 = ssub.s32 1024, 1024
          %190 = vsyncadd [#allocation6], %s189
          %s191 = sshll.u32 [#allocation7], 4
          %s192 = int_to_ptr.vmem [resolvable:$true] %s191
          %197 = dma.hbm_to_vmem [thread:$0]  %s3, 1024, %s192, [#allocation6], 64, 64, 4
        $region24: #{tpu_custom_call.1} parent=11 // pred_fallthru
          _
        // Predicated region
        $region25: #{tpu_custom_call.1} parent=11 // pred_check
          %p198 = pneg %p128
        $region26: #{tpu_custom_call.1} parent=11 // pred_check_branch
          %200 = sbr.rel (%p198) target = $region28
        $region27: #{tpu_custom_call.1} parent=11 // pred_region
          _
        $region28: #{tpu_custom_call.1} parent=11 // pred_fallthru
          _
      $region12: #{tpu_custom_call.1} parent=5 // pred_fallthru
        _
      %p201 = scmp.lt.s32.totalorder %s18, 2
      // Predicated region
      $region29: #{tpu_custom_call.1} parent=5 // pred_check
        %p202 = pneg %p201
      $region30: #{tpu_custom_call.1} parent=5 // pred_check_branch
        %204 = sbr.rel (%p202) target = $region32
      $region31: #{tpu_custom_call.1} parent=5 // pred_region
        // Predicated region
        $region33: #{tpu_custom_call.1} parent=31 // pred_check
          %p205 = pneg %p38
        $region34: #{tpu_custom_call.1} parent=31 // pred_check_branch
          %207 = sbr.rel (%p205) target = $region36
        $region35: #{tpu_custom_call.1} parent=31 // pred_region
          %s208 = sand.u32 %s28, 1
          %s209 = scalar_lea.sflag [#allocation3], %s208
          %s210 = sand.u32 %s28, 1
          %s211 = smul.addr %s210, 64
          %s212 = scalar_lea.vmem [#allocation2], %s211
          %s213 = smul.u32 4, %s18
          %s215 = ssub.s32 1024, 1024
          %216 = vsyncadd %s209, %s215
          %s217 = smul.addr %s213, 2
          %s218 = smul.addr %s217, 128
          %s219 = scalar_lea.hbm %s0, %s218
          %s220 = sshll.u32 %s212, 4
          %s221 = int_to_ptr.vmem [resolvable:$true] %s220
          %226 = dma.hbm_to_vmem [thread:$0]  %s219, 1024, %s221, %s209, 256, 256, 16
        $region36: #{tpu_custom_call.1} parent=31 // pred_fallthru
          _
      $region32: #{tpu_custom_call.1} parent=5 // pred_fallthru
        _
      %p227 = scmp.le.s32.totalorder 1, %s18
      %p228 = scmp.lt.s32.totalorder %s18, 3
      %p229 = pnand %p227, %p228
      %p230 = pneg %p229
      // Predicated region
      $region37: #{tpu_custom_call.1} parent=5 // pred_check
        _
      $region38: #{tpu_custom_call.1} parent=5 // pred_check_branch
        %232 = sbr.rel (%p229) target = $region40
      $region39: #{tpu_custom_call.1} parent=5 // pred_region
        %s233 = ssub.s32 %s18, 1
        %s234 = sand.u32 %s31, 1
        %s235 = scalar_lea.sflag [#allocation3], %s234
        %s236 = sand.u32 %s31, 1
        %s237 = smul.addr %s236, 64
        %s238 = scalar_lea.vmem [#allocation2], %s237
        // Predicated region
        $region41: #{tpu_custom_call.1} parent=39 // pred_check
          %p239 = pneg %p44
        $region42: #{tpu_custom_call.1} parent=39 // pred_check_branch
          %241 = sbr.rel (%p239) target = $region44
        $region43: #{tpu_custom_call.1} parent=39 // pred_region
          %242 = dma.done %s235, 1024
        $region44: #{tpu_custom_call.1} parent=39 // pred_fallthru
          _
        // Predicated region
        $region45: #{tpu_custom_call.1} parent=39 // pred_check
          %p243 = pneg %p65
        $region46: #{tpu_custom_call.1} parent=39 // pred_check_branch
          %245 = sbr.rel (%p243) target = $region48
        $region47: #{tpu_custom_call.1} parent=39 // pred_region
          %246 = dma.done [#allocation6], 2048
        $region48: #{tpu_custom_call.1} parent=39 // pred_fallthru
          _
        // Predicated region
        $region49: #{tpu_custom_call.1} parent=39 // pred_check
          %p247 = pneg %p107
        $region50: #{tpu_custom_call.1} parent=39 // pred_check_branch
          %249 = sbr.rel (%p247) target = $region52
        $region51: #{tpu_custom_call.1} parent=39 // pred_region
          %250 = dma.done [#allocation6], 1024
        $region52: #{tpu_custom_call.1} parent=39 // pred_fallthru
          _
        %s251 = sand.u32 %s31, 1
        %s252 = scalar_lea.sflag [#allocation3], %s251
        %s253 = sand.u32 %s31, 1
        %s254 = smul.addr %s253, 64
        %s255 = scalar_lea.vmem [#allocation2], %s254
        %p256 = pneg %p44
        %p257 = pneg %p41
        %p258 = pneg %p65
        %p259 = pneg %p62
        %p260 = pneg %p86
        %p261 = pneg %p83
        %p262 = pneg %p107
        %p263 = pneg %p104
        %p264 = pneg %p128
        %p265 = pneg %p125
        %p266 = pneg %p154
        %p267 = pneg %p151
        %s268 = sand.u32 %s141, 1
        %s269 = scalar_lea.sflag [#allocation4], %s268
        %s270 = sand.u32 %s141, 1
        %s271 = smul.addr %s270, 32
        %s272 = scalar_lea.vmem [#allocation8], %s271
        %s273 = smul.u32 4, %s23
        %s274 = smul.u32 4, %s23
        %v276 = vld [vmem:[%s238] sm:$0xff]
        %v277 = vld [vmem:[%s238 + $0x8] sm:$0xff]
        %v278 = vld [vmem:[%s238 + $0x10] sm:$0xff]
        %v279 = vld [vmem:[%s238 + $0x18] sm:$0xff]
        %v280 = vld [vmem:[%s238 + $0x20] sm:$0xff]
        %v281 = vld [vmem:[%s238 + $0x28] sm:$0xff]
        %v282 = vld [vmem:[%s238 + $0x30] sm:$0xff]
        %v283 = vld [vmem:[%s238 + $0x38] sm:$0xff]
        %v284 = vpack.c.bf16 %v278, %v276
        %v285 = vpack.c.bf16 %v279, %v277
        %v286 = vpack.c.bf16 %v282, %v280
        %v287 = vpack.c.bf16 %v283, %v281
        %v288 = vld [vmem:[#allocation5] sm:$0xf]
        %v289 = vld [vmem:[#allocation5 + $0x4] sm:$0xf]
        %v290 = vld [vmem:[#allocation5 + $0x8] sm:$0xf]
        %v291 = vld [vmem:[#allocation5 + $0xc] sm:$0xf]
        %v292 = vld [vmem:[#allocation5 + $0x10] sm:$0xf]
        %v293 = vld [vmem:[#allocation5 + $0x14] sm:$0xf]
        %v294 = vld [vmem:[#allocation5 + $0x18] sm:$0xf]
        %v295 = vld [vmem:[#allocation5 + $0x1c] sm:$0xf]
        %v296 = vld [vmem:[#allocation5 + $0x20] sm:$0xf]
        %v297 = vld [vmem:[#allocation5 + $0x24] sm:$0xf]
        %v298 = vld [vmem:[#allocation5 + $0x28] sm:$0xf]
        %v299 = vld [vmem:[#allocation5 + $0x2c] sm:$0xf]
        %v300 = vld [vmem:[#allocation5 + $0x30] sm:$0xf]
        %v301 = vld [vmem:[#allocation5 + $0x34] sm:$0xf]
        %v302 = vld [vmem:[#allocation5 + $0x38] sm:$0xf]
        %v303 = vld [vmem:[#allocation5 + $0x3c] sm:$0xf]
        %v304 = vld [vmem:[#allocation5 + $0x40] sm:$0xf]
        %v305 = vld [vmem:[#allocation5 + $0x44] sm:$0xf]
        %v306 = vld [vmem:[#allocation5 + $0x48] sm:$0xf]
        %v307 = vld [vmem:[#allocation5 + $0x4c] sm:$0xf]
        %v308 = vld [vmem:[#allocation5 + $0x50] sm:$0xf]
        %v309 = vld [vmem:[#allocation5 + $0x54] sm:$0xf]
        %v310 = vld [vmem:[#allocation5 + $0x58] sm:$0xf]
        %v311 = vld [vmem:[#allocation5 + $0x5c] sm:$0xf]
        %v312 = vld [vmem:[#allocation5 + $0x60] sm:$0xf]
        %v313 = vld [vmem:[#allocation5 + $0x64] sm:$0xf]
        %v314 = vld [vmem:[#allocation5 + $0x68] sm:$0xf]
        %v315 = vld [vmem:[#allocation5 + $0x6c] sm:$0xf]
        %v316 = vld [vmem:[#allocation5 + $0x70] sm:$0xf]
        %v317 = vld [vmem:[#allocation5 + $0x74] sm:$0xf]
        %v318 = vld [vmem:[#allocation5 + $0x78] sm:$0xf]
        %v319 = vld [vmem:[#allocation5 + $0x7c] sm:$0xf]
        %v320 = vld [vmem:[%s2] sm:$0x1]
        %v322 = vlaneseq
        %v323 = vshrl.u32 %v322, 7
        %v324 = vsub.s32 0, %v323
        %v325 = vrot.slane %v320, %v324
        %v359 = vunpack.c.l.b16 %v288
        %v360 = vunpack.c.l.b16 %v289
        %v361 = vunpack.c.l.b16 %v290
        %v362 = vunpack.c.l.b16 %v291
        %v363 = vunpack.c.l.b16 %v292
        %v364 = vunpack.c.l.b16 %v293
        %v365 = vunpack.c.l.b16 %v294
        %v366 = vunpack.c.l.b16 %v295
        %v367 = vunpack.c.l.b16 %v296
        %v368 = vunpack.c.l.b16 %v297
        %v369 = vunpack.c.l.b16 %v298
        %v370 = vunpack.c.l.b16 %v299
        %v371 = vunpack.c.l.b16 %v300
        %v372 = vunpack.c.l.b16 %v301
        %v373 = vunpack.c.l.b16 %v302
        %v374 = vunpack.c.l.b16 %v303
        %v375 = vunpack.c.l.b16 %v304
        %v376 = vunpack.c.l.b16 %v305
        %v377 = vunpack.c.l.b16 %v306
        %v378 = vunpack.c.l.b16 %v307
        %v379 = vunpack.c.l.b16 %v308
        %v380 = vunpack.c.l.b16 %v309
        %v381 = vunpack.c.l.b16 %v310
        %v382 = vunpack.c.l.b16 %v311
        %v383 = vunpack.c.l.b16 %v312
        %v384 = vunpack.c.l.b16 %v313
        %v385 = vunpack.c.l.b16 %v314
        %v386 = vunpack.c.l.b16 %v315
        %v387 = vunpack.c.l.b16 %v316
        %v388 = vunpack.c.l.b16 %v317
        %v389 = vunpack.c.l.b16 %v318
        %v390 = vunpack.c.l.b16 %v319
        %v391 = vpack.c.b16 %v360, %v359
        %v392 = vpack.c.b16 %v362, %v361
        %v393 = vpack.c.b16 %v364, %v363
        %v394 = vpack.c.b16 %v366, %v365
        %v395 = vpack.c.b16 %v368, %v367
        %v396 = vpack.c.b16 %v370, %v369
        %v397 = vpack.c.b16 %v372, %v371
        %v398 = vpack.c.b16 %v374, %v373
        %v399 = vpack.c.b16 %v376, %v375
        %v400 = vpack.c.b16 %v378, %v377
        %v401 = vpack.c.b16 %v380, %v379
        %v402 = vpack.c.b16 %v382, %v381
        %v403 = vpack.c.b16 %v384, %v383
        %v404 = vpack.c.b16 %v386, %v385
        %v405 = vpack.c.b16 %v388, %v387
        %v406 = vpack.c.b16 %v390, %v389
        %423 = vmatprep.subr.bf16.mxu0 0
        %424 = vmatpush1.bf16.msra.mxu0 %v398
        %425 = vmatprep.subr.bf16.mxu0 0
        %426 = vmatpush1.bf16.msra.mxu0 %v397
        %427 = vmatprep.subr.bf16.mxu0 0
        %428 = vmatpush1.bf16.msra.mxu0 %v396
        %429 = vmatprep.subr.bf16.mxu0 0
        %430 = vmatpush1.bf16.msra.mxu0 %v395
        %431 = vmatprep.subr.bf16.mxu0 0
        %432 = vmatpush1.bf16.msra.mxu0 %v394
        %433 = vmatprep.subr.bf16.mxu0 0
        %434 = vmatpush1.bf16.msra.mxu0 %v393
        %435 = vmatprep.subr.bf16.mxu0 0
        %436 = vmatpush1.bf16.msra.mxu0 %v392
        %437 = vmatprep.subr.bf16.mxu0 0
        %438 = vmatpush1.bf16.msra.mxu0 %v391
        %439 = vmatprep.subr.bf16.mxu0 0
        %440 = vmatpush2.bf16.msra.mxu0 %v406
        %441 = vmatprep.subr.bf16.mxu0 0
        %442 = vmatpush2.bf16.msra.mxu0 %v405
        %443 = vmatprep.subr.bf16.mxu0 0
        %444 = vmatpush2.bf16.msra.mxu0 %v404
        %445 = vmatprep.subr.bf16.mxu0 0
        %446 = vmatpush2.bf16.msra.mxu0 %v403
        %447 = vmatprep.subr.bf16.mxu0 0
        %448 = vmatpush2.bf16.msra.mxu0 %v402
        %449 = vmatprep.subr.bf16.mxu0 0
        %450 = vmatpush2.bf16.msra.mxu0 %v401
        %451 = vmatprep.subr.bf16.mxu0 0
        %452 = vmatpush2.bf16.msra.mxu0 %v400
        %453 = vmatprep.subr.bf16.mxu0 0
        %454 = vmatpush2.bf16.msra.mxu0 %v399
        %455 = vmatprep.mubr.bf16.mxu0 %v285
        %456 = vmatmul.mubr.bf16.gmra.mxu0 %v284
        %v457 = vpop.f32.mrf.mxu0
        %v458 = vadd.f32 %v325, %v457
        %v459 = vpop.f32.mrf.mxu0
        %v460 = vpop.f32.mrf.mxu0
        %v461 = vadd.f32 %v325, %v460
        %v462 = vpop.f32.mrf.mxu0
        %463 = vmatprep.mubr.bf16.mxu0 %v287
        %464 = vmatmul.mubr.bf16.gmra.mxu0 %v286
        %v465 = vpop.f32.mrf.mxu0
        %v466 = vadd.f32 %v325, %v465
        %v467 = vpop.f32.mrf.mxu0
        %v468 = vpop.f32.mrf.mxu0
        %v469 = vadd.f32 %v325, %v468
        %v470 = vpop.f32.mrf.mxu0
        %471 = vdwg.mxu0
        %v472 = vmax.f32 %v458, 0.0
        %v473 = vmax.f32 %v461, 0.0
        %v474 = vmax.f32 %v466, 0.0
        %v475 = vmax.f32 %v469, 0.0
        %v476 = vpack.c.bf16 %v473, %v472
        %v477 = vpack.c.bf16 %v475, %v474
        %v478 = vld [vmem:[#allocation7] sm:$0xf]
        %v479 = vld [vmem:[#allocation7 + $0x4] sm:$0xf]
        %v480 = vld [vmem:[#allocation7 + $0x8] sm:$0xf]
        %v481 = vld [vmem:[#allocation7 + $0xc] sm:$0xf]
        %v482 = vld [vmem:[#allocation7 + $0x10] sm:$0xf]
        %v483 = vld [vmem:[#allocation7 + $0x14] sm:$0xf]
        %v484 = vld [vmem:[#allocation7 + $0x18] sm:$0xf]
        %v485 = vld [vmem:[#allocation7 + $0x1c] sm:$0xf]
        %v486 = vld [vmem:[#allocation7 + $0x20] sm:$0xf]
        %v487 = vld [vmem:[#allocation7 + $0x24] sm:$0xf]
        %v488 = vld [vmem:[#allocation7 + $0x28] sm:$0xf]
        %v489 = vld [vmem:[#allocation7 + $0x2c] sm:$0xf]
        %v490 = vld [vmem:[#allocation7 + $0x30] sm:$0xf]
        %v491 = vld [vmem:[#allocation7 + $0x34] sm:$0xf]
        %v492 = vld [vmem:[#allocation7 + $0x38] sm:$0xf]
        %v493 = vld [vmem:[#allocation7 + $0x3c] sm:$0xf]
        %v494 = vld [vmem:[%s4] sm:$0x1]
        %v496 = vlaneseq
        %v497 = vshrl.u32 %v496, 7
        %v498 = vsub.s32 0, %v497
        %v499 = vrot.slane %v494, %v498
        %v517 = vunpack.c.l.b16 %v478
        %v518 = vunpack.c.l.b16 %v479
        %v519 = vunpack.c.l.b16 %v480
        %v520 = vunpack.c.l.b16 %v481
        %v521 = vunpack.c.l.b16 %v482
        %v522 = vunpack.c.l.b16 %v483
        %v523 = vunpack.c.l.b16 %v484
        %v524 = vunpack.c.l.b16 %v485
        %v525 = vunpack.c.l.b16 %v486
        %v526 = vunpack.c.l.b16 %v487
        %v527 = vunpack.c.l.b16 %v488
        %v528 = vunpack.c.l.b16 %v489
        %v529 = vunpack.c.l.b16 %v490
        %v530 = vunpack.c.l.b16 %v491
        %v531 = vunpack.c.l.b16 %v492
        %v532 = vunpack.c.l.b16 %v493
        %v533 = vpack.c.b16 %v518, %v517
        %v534 = vpack.c.b16 %v520, %v519
        %v535 = vpack.c.b16 %v522, %v521
        %v536 = vpack.c.b16 %v524, %v523
        %v537 = vpack.c.b16 %v526, %v525
        %v538 = vpack.c.b16 %v528, %v527
        %v539 = vpack.c.b16 %v530, %v529
        %v540 = vpack.c.b16 %v532, %v531
        %549 = vmatprep.subr.bf16.mxu0 0
        %550 = vmatpush1.bf16.msra.mxu0 %v540
        %551 = vmatprep.subr.bf16.mxu0 0
        %552 = vmatpush1.bf16.msra.mxu0 %v539
        %553 = vmatprep.subr.bf16.mxu0 0
        %554 = vmatpush1.bf16.msra.mxu0 %v538
        %555 = vmatprep.subr.bf16.mxu0 0
        %556 = vmatpush1.bf16.msra.mxu0 %v537
        %557 = vmatprep.subr.bf16.mxu0 0
        %558 = vmatpush1.bf16.msra.mxu0 %v536
        %559 = vmatprep.subr.bf16.mxu0 0
        %560 = vmatpush1.bf16.msra.mxu0 %v535
        %561 = vmatprep.subr.bf16.mxu0 0
        %562 = vmatpush1.bf16.msra.mxu0 %v534
        %563 = vmatprep.subr.bf16.mxu0 0
        %564 = vmatpush1.bf16.msra.mxu0 %v533
        %565 = vmatprep.subr.bf16.mxu0 0
        %566 = vmatpush2.bf16.msra.mxu0 0
        %567 = vmatprep.subr.bf16.mxu0 0
        %568 = vmatpush2.bf16.msra.mxu0 0
        %569 = vmatprep.subr.bf16.mxu0 0
        %570 = vmatpush2.bf16.msra.mxu0 0
        %571 = vmatprep.subr.bf16.mxu0 0
        %572 = vmatpush2.bf16.msra.mxu0 0
        %573 = vmatprep.subr.bf16.mxu0 0
        %574 = vmatpush2.bf16.msra.mxu0 0
        %575 = vmatprep.subr.bf16.mxu0 0
        %576 = vmatpush2.bf16.msra.mxu0 0
        %577 = vmatprep.subr.bf16.mxu0 0
        %578 = vmatpush2.bf16.msra.mxu0 0
        %579 = vmatprep.subr.bf16.mxu0 0
        %580 = vmatpush2.bf16.msra.mxu0 0
        %581 = vmatprep.mubr.bf16.mxu0 0
        %582 = vmatmul.mubr.bf16.gmra.mxu0 %v476
        %v583 = vpop.f32.mrf.mxu0
        %v584 = vadd.f32 %v499, %v583
        %v585 = vpop.f32.mrf.mxu0
        %v586 = vpop.f32.mrf.mxu0
        %v587 = vadd.f32 %v499, %v586
        %v588 = vpop.f32.mrf.mxu0
        %589 = vmatprep.mubr.bf16.mxu0 0
        %590 = vmatmul.mubr.bf16.gmra.mxu0 %v477
        %v591 = vpop.f32.mrf.mxu0
        %v592 = vadd.f32 %v499, %v591
        %v593 = vpop.f32.mrf.mxu0
        %v594 = vpop.f32.mrf.mxu0
        %v595 = vadd.f32 %v499, %v594
        %v596 = vpop.f32.mrf.mxu0
        %597 = vdwg.mxu0
        %598 = vmax.xlane.f32.xlu0 %v584
        %v599 = vpop.xlane.xlu0 %598
        %600 = vmax.xlane.f32.xlu0 %v587
        %v601 = vpop.xlane.xlu0 %600
        %602 = vmax.xlane.f32.xlu0 %v592
        %v603 = vpop.xlane.xlu0 %602
        %604 = vmax.xlane.f32.xlu0 %v595
        %v605 = vpop.xlane.xlu0 %604
        %v606 = vsub.f32 %v584, %v599
        %v607 = vsub.f32 %v587, %v601
        %v608 = vsub.f32 %v592, %v603
        %v609 = vsub.f32 %v595, %v605
        %v610 = vmul.f32 %v606, 1.442695
        %v611 = vpow.pop %v610
        %v612 = vmul.f32 %v607, 1.442695
        %v613 = vpow.pop %v612
        %v614 = vmul.f32 %v608, 1.442695
        %v615 = vpow.pop %v614
        %v616 = vmul.f32 %v609, 1.442695
        %v617 = vpow.pop %v616
        %618 = vadd.xlane.f32.xlu0 %v611
        %v619 = vpop.xlane.xlu0 %618
        %620 = vadd.xlane.f32.xlu0 %v613
        %v621 = vpop.xlane.xlu0 %620
        %622 = vadd.xlane.f32.xlu0 %v615
        %v623 = vpop.xlane.xlu0 %622
        %624 = vadd.xlane.f32.xlu0 %v617
        %v625 = vpop.xlane.xlu0 %624
        %v626 = vrcp.pop %v619
        %v627 = vrcp.pop %v621
        %v628 = vrcp.pop %v623
        %v629 = vrcp.pop %v625
        %v630 = vmul.f32 %v611, %v626
        %v631 = vmul.f32 %v613, %v627
        %v632 = vmul.f32 %v615, %v628
        %v633 = vmul.f32 %v617, %v629
        %634 = vst [vmem:[%s272] sm:$0xff] %v630
        %635 = vst [vmem:[%s272 + $0x8] sm:$0xff] %v631
        %636 = vst [vmem:[%s272 + $0x10] sm:$0xff] %v632
        %637 = vst [vmem:[%s272 + $0x18] sm:$0xff] %v633
        %s638 = sand.u32 %s141, 1
        %s639 = scalar_lea.sflag [#allocation4], %s638
        %s640 = sand.u32 %s141, 1
        %s641 = smul.addr %s640, 32
        %s642 = scalar_lea.vmem [#allocation8], %s641
        // Predicated region
        $region53: #{tpu_custom_call.1} parent=39 // pred_check
          %p643 = pneg %p151
        $region54: #{tpu_custom_call.1} parent=39 // pred_check_branch
          %645 = sbr.rel (%p643) target = $region56
        $region55: #{tpu_custom_call.1} parent=39 // pred_region
          %s646 = smul.u32 4, %s23
          %s648 = ssub.s32 512, 512
          %649 = vsyncadd %s639, %s648
          %s650 = smul.addr %s646, 128
          %s651 = scalar_lea.hbm %s5, %s650
          %s652 = sshll.u32 %s642, 4
          %s653 = int_to_ptr.vmem [resolvable:$true] %s652
          %658 = dma.vmem_to_hbm [thread:$0]  %s653, 512, %s651, %s639, 128, 128, 8
        $region56: #{tpu_custom_call.1} parent=39 // pred_fallthru
          _
      $region40: #{tpu_custom_call.1} parent=5 // pred_fallthru
        _
      %p659 = scmp.le.s32.totalorder 2, %s18
      // Predicated region
      $region57: #{tpu_custom_call.1} parent=5 // pred_check
        %p660 = pneg %p659
      $region58: #{tpu_custom_call.1} parent=5 // pred_check_branch
        %662 = sbr.rel (%p660) target = $region60
      $region59: #{tpu_custom_call.1} parent=5 // pred_region
        %s663 = ssub.s32 %s18, 2
        // Predicated region
        $region61: #{tpu_custom_call.1} parent=59 // pred_check
          %p664 = pneg %p157
        $region62: #{tpu_custom_call.1} parent=59 // pred_check_branch
          %666 = sbr.rel (%p664) target = $region64
        $region63: #{tpu_custom_call.1} parent=59 // pred_region
          %s667 = sand.u32 %s142, 1
          %s668 = scalar_lea.sflag [#allocation4], %s667
          %s669 = sand.u32 %s142, 1
          %s670 = smul.addr %s669, 32
          %s671 = scalar_lea.vmem [#allocation8], %s670
          %672 = dma.done %s668, 512
        $region64: #{tpu_custom_call.1} parent=59 // pred_fallthru
          _
      $region60: #{tpu_custom_call.1} parent=5 // pred_fallthru
        _
    $region6: #{tpu_custom_call.1} parent=1 // loop_footer
      %s22 = sadd.s32 1, %s18
    $region7: #{tpu_custom_call.1} parent=1 // loop_footer_branch
      %17 = sbr.rel target = $region3
    $region8: #{tpu_custom_call.1} parent=1 // loop_exit
      _
    %673 = vsyncpa [#allocation3], 1
    %s674 = scalar_lea.sflag [#allocation3], 1
    %675 = vsyncpa %s674, 1
    %676 = vsyncpa [#allocation6], 1
    %677 = vsyncpa [#allocation4], 1
    %s678 = scalar_lea.sflag [#allocation4], 1
    %679 = vsyncpa %s678, 1

</llo_original>
